<compile_context>
chip_gen: v7x
topology: tpu7x:2x2x1
jax: 0.10.0
libtpu: 0.0.40
codegen_flags: <defaults>
</compile_context>

<pallas_src>
from functools import partial

import numpy as np
import jax
import jax.numpy as jnp
from jax.experimental import pallas as pl
from jax.experimental.pallas import tpu as pltpu

NEG_SLOPE = 0.01  # torch.nn.LeakyReLU default


def _leaky(x):
    return jnp.where(x > 0, x, NEG_SLOPE * x)


# --------------------------------------------------------------------------
# Fused kernel: conv1d matmul + compound branch + protein branch + head MLP.
# --------------------------------------------------------------------------
def s2dta_kernel(pcols_ref, seqwb_ref,
                 ac_ref, cx_ref, cmt_ref,
                 ap_ref, pmt_ref,
                 packc_ref, packp_ref, packh_ref,
                 o_ref, *, hid, out_dim):
    # ---- 1. Conv1d(21->128, k=5, p=2) as a single (Np, 128) @ (128, 128) ----
    swb = seqwb_ref[...]                       # (K*Cin padded + 1, 128)
    kc = swb.shape[0] - 1
    p_feat = (jnp.dot(pcols_ref[...], swb[:kc, :],
                      preferred_element_type=jnp.float32)
              + swb[kc:kc + 1, :])             # (Np, 128), no activation

    # ---- SAGEConv(sum) with stacked [Wl | Wr] weights + LeakyReLU ----
    def sage(a, h, w_stacked, b, dout):
        z = jnp.dot(h, w_stacked, preferred_element_type=jnp.float32)  # (N, 2*dout)
        agg = jnp.dot(a, z[:, :dout], preferred_element_type=jnp.float32)
        return _leaky(agg + z[:, dout:2 * dout] + b)

    # ---- one graph branch: 3x SAGE + global_max_pool + Linear + LeakyReLU ----
    def branch(a, x, mask_t, pack):
        din1 = pack.shape[0] - (7 * hid + 4)
        r = 0
        w1 = pack[r:r + din1, 0:2 * hid]; r += din1
        w2 = pack[r:r + hid, 0:4 * hid]; r += hid
        w3 = pack[r:r + 2 * hid, 0:8 * hid]; r += 2 * hid
        fw = pack[r:r + 4 * hid, 0:out_dim]; r += 4 * hid
        b1 = pack[r:r + 1, 0:hid]
        b2 = pack[r + 1:r + 2, 0:2 * hid]
        b3 = pack[r + 2:r + 3, 0:4 * hid]
        fb = pack[r + 3:r + 4, 0:out_dim]

        h = sage(a, x, w1, b1, hid)
        h = sage(a, h, w2, b2, 2 * hid)
        h = sage(a, h, w3, b3, 4 * hid)        # (N, 4*hid)

        # global_max_pool: per-graph masked max (graph count is small & static)
        rows = []
        for g in range(mask_t.shape[1]):
            mg = mask_t[:, g:g + 1]            # (N, 1) one-hot membership column
            rows.append(jnp.max(jnp.where(mg > 0.5, h, -1e30),
                                axis=0, keepdims=True))
        pooled = jnp.concatenate(rows, axis=0)  # (Bg, 4*hid)

        return _leaky(jnp.dot(pooled, fw, preferred_element_type=jnp.float32) + fb)

    cpool = branch(ac_ref[...], cx_ref[...], cmt_ref[...], packc_ref[...])
    ppool = branch(ap_ref[...], p_feat, pmt_ref[...], packp_ref[...])

    # ---- head: concat + fc1 + LeakyReLU + out (lane-dense padded output) ----
    ph = packh_ref[...]
    H = ph.shape[1]                            # fc1 hidden width (256)
    r0 = 2 * out_dim
    fc1_w = ph[0:r0, :]                        # (2*out_dim, H)
    out_w = ph[r0:r0 + H, 0:128]               # (H, 128) zero-padded columns
    fc1_b = ph[r0 + H:r0 + H + 1, :]           # (1, H)
    out_b = ph[r0 + H + 1:r0 + H + 2, 0:128]   # (1, 128) zero-padded

    cat = jnp.concatenate([cpool, ppool], axis=1)       # (Bg, 2*out_dim)
    hdd = _leaky(jnp.dot(cat, fc1_w, preferred_element_type=jnp.float32) + fc1_b)
    o_ref[...] = (jnp.dot(hdd, out_w, preferred_element_type=jnp.float32) + out_b)


# --------------------------------------------------------------------------
# Wrapper-side packing / graph encoding (cheap XLA ops, static shapes).
# --------------------------------------------------------------------------
def dense_adj(edge_index, n_nodes):
    src, dst = edge_index[0], edge_index[1]
    a = jnp.zeros((n_nodes, n_nodes), jnp.float32)
    return a.at[dst, src].add(1.0)          # message flows src -> dst, sum-aggr


def batch_mask_T(batch_vec, n_graphs):
    # (N, Bg) one-hot membership, N on sublanes so per-graph columns slice free
    return (batch_vec[:, None] == jnp.arange(n_graphs)[None, :]).astype(jnp.float32)


def pack_branch(conv1, conv2, conv3, fc_w, fc_b, hid, out_dim):
    (wl1, wr1, b1), (wl2, wr2, b2), (wl3, wr3, b3) = conv1, conv2, conv3
    din1 = wl1.shape[0]
    width = max(8 * hid, out_dim)
    rows = din1 + 7 * hid + 4
    pk = jnp.zeros((rows, width), jnp.float32)
    r = 0
    pk = pk.at[r:r + din1, 0:2 * hid].set(jnp.concatenate([wl1, wr1], axis=1)); r += din1
    pk = pk.at[r:r + hid, 0:4 * hid].set(jnp.concatenate([wl2, wr2], axis=1)); r += hid
    pk = pk.at[r:r + 2 * hid, 0:8 * hid].set(jnp.concatenate([wl3, wr3], axis=1)); r += 2 * hid
    pk = pk.at[r:r + 4 * hid, 0:out_dim].set(fc_w); r += 4 * hid
    pk = pk.at[r, 0:hid].set(b1[0])
    pk = pk.at[r + 1, 0:2 * hid].set(b2[0])
    pk = pk.at[r + 2, 0:4 * hid].set(b3[0])
    pk = pk.at[r + 3, 0:out_dim].set(fc_b[0])
    return pk


def pack_head(fc1_w, fc1_b, out_w, out_b):
    r0, H = fc1_w.shape                        # (2*out_dim, 256)
    n_out = out_w.shape[1]
    pk = jnp.zeros((r0 + H + 2, H), jnp.float32)
    pk = pk.at[0:r0, :].set(fc1_w)
    pk = pk.at[r0:r0 + H, 0:n_out].set(out_w)  # lane-padded out_w (H, 128)
    pk = pk.at[r0 + H, :].set(fc1_b[0])
    pk = pk.at[r0 + H + 1, 0:n_out].set(out_b[0])
    return pk


# --------------------------------------------------------------------------
# full S2DTA forward (pocket=False, attn=False, net='SAGE') -> one pallas_call
# --------------------------------------------------------------------------
def s2dta_forward(params, seq_x, seq_lens, comp_x, comp_ei, comp_batch,
                  prot_ei, prot_batch, n_graphs, *, hid, out_dim):
    B, L, Cin = seq_x.shape
    K, pad = 5, 2
    Cout = params["seq_w"].shape[2]
    n_out = params["out_w"].shape[1]
    assert n_out <= 128 and 2 * out_dim <= 128

    # im2col + static gather of valid rows (seq_lens are static Python ints)
    xp = jnp.pad(seq_x, ((0, 0), (pad, pad), (0, 0)))
    cols = jnp.stack([xp[:, k:k + L, :] for k in range(K)], axis=2)
    cols = cols.reshape(B * L, K * Cin)
    idx = np.concatenate([np.arange(seq_lens[b]) + b * L for b in range(B)])
    kc_pad = 128 * ((K * Cin + 127) // 128)                 # 105 -> 128
    p_cols = jnp.pad(cols[idx], ((0, 0), (0, kc_pad - K * Cin)))

    seq_w2 = params["seq_w"].reshape(K * Cin, Cout)
    seqwb = jnp.zeros((kc_pad + 1, Cout), jnp.float32)
    seqwb = seqwb.at[:K * Cin, :].set(seq_w2)
    seqwb = seqwb.at[kc_pad, :].set(params["seq_b"][0])

    # dense adjacency + membership masks (XLA scatter, not Pallas)
    Ac = dense_adj(comp_ei, comp_x.shape[0])
    Ap = dense_adj(prot_ei, int(idx.shape[0]))
    cmT = batch_mask_T(comp_batch, n_graphs)
    pmT = batch_mask_T(prot_batch, n_graphs)

    packC = pack_branch(params["cconv1"], params["cconv2"], params["cconv3"],
                        params["cfc_w"], params["cfc_b"], hid, out_dim)
    packP = pack_branch(params["pconv1"], params["pconv2"], params["pconv3"],
                        params["pfc_w"], params["pfc_b"], hid, out_dim)
    packH = pack_head(params["fc1_w"], params["fc1_b"],
                      params["out_w"], params["out_b"])

    vmem_spec = pl.BlockSpec(memory_space=pltpu.MemorySpace.VMEM)
    out_padded = pl.pallas_call(
        partial(s2dta_kernel, hid=hid, out_dim=out_dim),
        out_shape=jax.ShapeDtypeStruct((n_graphs, 128), jnp.float32),
        in_specs=[vmem_spec] * 10,
        out_specs=vmem_spec,
    )(p_cols, seqwb, Ac, comp_x, cmT, Ap, pmT, packC, packP, packH)

    return out_padded[:, :n_out]


# --------------------------------------------------------------------------
# deterministic parameter init + example run
# --------------------------------------------------------------------------
def _init(key, shape, scale=0.1):
    return scale * jax.random.normal(key, shape, jnp.float32)


if __name__ == "__main__":
    # model config (small)
    hidden_dim = 8          # -> layer widths 8, 16, 32
    output_dim = 32
    n_output_dim = 1
    compound_feat_dim = 16
    protein_feat_dim = 128  # = Conv1d out channels
    B = 2                   # number of examples / graphs
    L = 16                  # padded protein sequence length
    seq_lens = (12, 10)     # valid lengths per example (static)
    Nc = 10                 # compound graph nodes (5 per graph)
    Np = sum(seq_lens)      # protein graph nodes

    key = jax.random.PRNGKey(0)
    ks = list(jax.random.split(key, 32))

    params = {
        "seq_w": _init(ks[0], (5, 21, 128)), "seq_b": _init(ks[1], (1, 128)),
        "cconv1": (_init(ks[2], (compound_feat_dim, hidden_dim)),
                   _init(ks[3], (compound_feat_dim, hidden_dim)),
                   _init(ks[4], (1, hidden_dim))),
        "cconv2": (_init(ks[5], (hidden_dim, hidden_dim * 2)),
                   _init(ks[6], (hidden_dim, hidden_dim * 2)),
                   _init(ks[7], (1, hidden_dim * 2))),
        "cconv3": (_init(ks[8], (hidden_dim * 2, hidden_dim * 4)),
                   _init(ks[9], (hidden_dim * 2, hidden_dim * 4)),
                   _init(ks[10], (1, hidden_dim * 4))),
        "cfc_w": _init(ks[11], (hidden_dim * 4, output_dim)),
        "cfc_b": _init(ks[12], (1, output_dim)),
        "pconv1": (_init(ks[13], (protein_feat_dim, hidden_dim)),
                   _init(ks[14], (protein_feat_dim, hidden_dim)),
                   _init(ks[15], (1, hidden_dim))),
        "pconv2": (_init(ks[16], (hidden_dim, hidden_dim * 2)),
                   _init(ks[17], (hidden_dim, hidden_dim * 2)),
                   _init(ks[18], (1, hidden_dim * 2))),
        "pconv3": (_init(ks[19], (hidden_dim * 2, hidden_dim * 4)),
                   _init(ks[20], (hidden_dim * 2, hidden_dim * 4)),
                   _init(ks[21], (1, hidden_dim * 4))),
        "pfc_w": _init(ks[22], (hidden_dim * 4, output_dim)),
        "pfc_b": _init(ks[23], (1, output_dim)),
        "fc1_w": _init(ks[24], (output_dim * 2, 256)),
        "fc1_b": _init(ks[25], (1, 256)),
        "out_w": _init(ks[26], (256, n_output_dim)),
        "out_b": _init(ks[27], (1, n_output_dim)),
    }

    # example inputs
    seq_x = jax.random.normal(ks[28], (B, L, 21), jnp.float32)        # data[0][0][0]
    comp_x = jax.random.normal(ks[29], (Nc, compound_feat_dim), jnp.float32)
    comp_ei = jax.random.randint(ks[30], (2, 20), 0, Nc)              # compound edges
    comp_batch = jnp.array([0] * 5 + [1] * 5, jnp.int32)
    prot_ei = jax.random.randint(ks[31], (2, 30), 0, Np)              # protein edges
    prot_batch = jnp.array([0] * seq_lens[0] + [1] * seq_lens[1], jnp.int32)

    out = s2dta_forward(params, seq_x, seq_lens, comp_x, comp_ei, comp_batch,
                        prot_ei, prot_batch, n_graphs=B,
                        hid=hidden_dim, out_dim=output_dim)
    out = jax.block_until_ready(out)
    assert out.shape == (B, n_output_dim)
    print("KERNEL_OK")
</pallas_src>

<mosaic_0001>
module attributes {stable_mosaic.version = 11 : i64} {
  func.func @s2dta_kernel(%arg0: memref<22x128xf32, #tpu.memory_space<vmem>>, %arg1: memref<129x128xf32, #tpu.memory_space<vmem>>, %arg2: memref<10x10xf32, #tpu.memory_space<vmem>>, %arg3: memref<10x16xf32, #tpu.memory_space<vmem>>, %arg4: memref<10x2xf32, #tpu.memory_space<vmem>>, %arg5: memref<22x22xf32, #tpu.memory_space<vmem>>, %arg6: memref<22x2xf32, #tpu.memory_space<vmem>>, %arg7: memref<76x64xf32, #tpu.memory_space<vmem>>, %arg8: memref<188x64xf32, #tpu.memory_space<vmem>>, %arg9: memref<322x256xf32, #tpu.memory_space<vmem>>, %arg10: memref<2x128xf32, #tpu.memory_space<vmem>>) attributes {dimension_semantics = [], scalar_prefetch = 0 : i64, scratch_operands = 0 : i64, tpu.core_type = #tpu.core_type<tc>} {
    %c0 = arith.constant 0 : index
    %c0_0 = arith.constant 0 : index
    %0 = vector.load %arg1[%c0, %c0_0] : memref<129x128xf32, #tpu.memory_space<vmem>>, vector<129x128xf32>
    %c0_1 = arith.constant 0 : index
    %c0_2 = arith.constant 0 : index
    %1 = vector.load %arg0[%c0_1, %c0_2] : memref<22x128xf32, #tpu.memory_space<vmem>>, vector<22x128xf32>
    %2 = vector.extract_strided_slice %0 {offsets = [0, 0], sizes = [128, 128], strides = [1, 1]} : vector<129x128xf32> to vector<128x128xf32>
    %cst = arith.constant dense<0.000000e+00> : vector<22x128xf32>
    %3 = tpu.matmul %1, %2, %cst {dimension_numbers = #tpu.dot_dimension_numbers<[1], [0], [0], [1], [0, 0, 1, 1], [], []>} : vector<22x128xf32>, vector<128x128xf32>, vector<22x128xf32> -> vector<22x128xf32>
    %4 = vector.extract_strided_slice %0 {offsets = [128, 0], sizes = [1, 128], strides = [1, 1]} : vector<129x128xf32> to vector<1x128xf32>
    %5 = vector.broadcast %4 : vector<1x128xf32> to vector<22x128xf32>
    %6 = arith.addf %3, %5 : vector<22x128xf32>
    %c0_3 = arith.constant 0 : index
    %c0_4 = arith.constant 0 : index
    %7 = vector.load %arg2[%c0_3, %c0_4] : memref<10x10xf32, #tpu.memory_space<vmem>>, vector<10x10xf32>
    %c0_5 = arith.constant 0 : index
    %c0_6 = arith.constant 0 : index
    %8 = vector.load %arg3[%c0_5, %c0_6] : memref<10x16xf32, #tpu.memory_space<vmem>>, vector<10x16xf32>
    %c0_7 = arith.constant 0 : index
    %c0_8 = arith.constant 0 : index
    %9 = vector.load %arg4[%c0_7, %c0_8] : memref<10x2xf32, #tpu.memory_space<vmem>>, vector<10x2xf32>
    %c0_9 = arith.constant 0 : index
    %c0_10 = arith.constant 0 : index
    %10 = vector.load %arg7[%c0_9, %c0_10] : memref<76x64xf32, #tpu.memory_space<vmem>>, vector<76x64xf32>
    %11 = vector.extract_strided_slice %10 {offsets = [0, 0], sizes = [16, 16], strides = [1, 1]} : vector<76x64xf32> to vector<16x16xf32>
    %12 = vector.extract_strided_slice %10 {offsets = [16, 0], sizes = [8, 32], strides = [1, 1]} : vector<76x64xf32> to vector<8x32xf32>
    %13 = vector.extract_strided_slice %10 {offsets = [24, 0], sizes = [16, 64], strides = [1, 1]} : vector<76x64xf32> to vector<16x64xf32>
    %14 = vector.extract_strided_slice %10 {offsets = [40, 0], sizes = [32, 32], strides = [1, 1]} : vector<76x64xf32> to vector<32x32xf32>
    %15 = vector.extract_strided_slice %10 {offsets = [72, 0], sizes = [1, 8], strides = [1, 1]} : vector<76x64xf32> to vector<1x8xf32>
    %16 = vector.extract_strided_slice %10 {offsets = [73, 0], sizes = [1, 16], strides = [1, 1]} : vector<76x64xf32> to vector<1x16xf32>
    %17 = vector.extract_strided_slice %10 {offsets = [74, 0], sizes = [1, 32], strides = [1, 1]} : vector<76x64xf32> to vector<1x32xf32>
    %18 = vector.extract_strided_slice %10 {offsets = [75, 0], sizes = [1, 32], strides = [1, 1]} : vector<76x64xf32> to vector<1x32xf32>
    %cst_11 = arith.constant dense<0.000000e+00> : vector<10x16xf32>
    %19 = tpu.matmul %8, %11, %cst_11 {dimension_numbers = #tpu.dot_dimension_numbers<[1], [0], [0], [1], [0, 0, 1, 1], [], []>} : vector<10x16xf32>, vector<16x16xf32>, vector<10x16xf32> -> vector<10x16xf32>
    %20 = vector.extract_strided_slice %19 {offsets = [0, 0], sizes = [10, 8], strides = [1, 1]} : vector<10x16xf32> to vector<10x8xf32>
    %cst_12 = arith.constant dense<0.000000e+00> : vector<10x8xf32>
    %21 = tpu.matmul %7, %20, %cst_12 {dimension_numbers = #tpu.dot_dimension_numbers<[1], [0], [0], [1], [0, 0, 1, 1], [], []>} : vector<10x10xf32>, vector<10x8xf32>, vector<10x8xf32> -> vector<10x8xf32>
    %22 = vector.extract_strided_slice %19 {offsets = [0, 8], sizes = [10, 8], strides = [1, 1]} : vector<10x16xf32> to vector<10x8xf32>
    %23 = arith.addf %21, %22 : vector<10x8xf32>
    %24 = vector.broadcast %15 : vector<1x8xf32> to vector<10x8xf32>
    %25 = arith.addf %23, %24 : vector<10x8xf32>
    %cst_13 = arith.constant 0.000000e+00 : f32
    %26 = vector.broadcast %cst_13 : f32 to vector<10x8xf32>
    %27 = arith.cmpf ogt, %25, %26 : vector<10x8xf32>
    %cst_14 = arith.constant 0.00999999977 : f32
    %28 = vector.broadcast %cst_14 : f32 to vector<10x8xf32>
    %29 = arith.mulf %28, %25 : vector<10x8xf32>
    %30 = arith.select %27, %25, %29 : vector<10x8xi1>, vector<10x8xf32>
    %cst_15 = arith.constant dense<0.000000e+00> : vector<10x32xf32>
    %31 = tpu.matmul %30, %12, %cst_15 {dimension_numbers = #tpu.dot_dimension_numbers<[1], [0], [0], [1], [0, 0, 1, 1], [], []>} : vector<10x8xf32>, vector<8x32xf32>, vector<10x32xf32> -> vector<10x32xf32>
    %32 = vector.extract_strided_slice %31 {offsets = [0, 0], sizes = [10, 16], strides = [1, 1]} : vector<10x32xf32> to vector<10x16xf32>
    %cst_16 = arith.constant dense<0.000000e+00> : vector<10x16xf32>
    %33 = tpu.matmul %7, %32, %cst_16 {dimension_numbers = #tpu.dot_dimension_numbers<[1], [0], [0], [1], [0, 0, 1, 1], [], []>} : vector<10x10xf32>, vector<10x16xf32>, vector<10x16xf32> -> vector<10x16xf32>
    %34 = vector.extract_strided_slice %31 {offsets = [0, 16], sizes = [10, 16], strides = [1, 1]} : vector<10x32xf32> to vector<10x16xf32>
    %35 = arith.addf %33, %34 : vector<10x16xf32>
    %36 = vector.broadcast %16 : vector<1x16xf32> to vector<10x16xf32>
    %37 = arith.addf %35, %36 : vector<10x16xf32>
    %cst_17 = arith.constant 0.000000e+00 : f32
    %38 = vector.broadcast %cst_17 : f32 to vector<10x16xf32>
    %39 = arith.cmpf ogt, %37, %38 : vector<10x16xf32>
    %cst_18 = arith.constant 0.00999999977 : f32
    %40 = vector.broadcast %cst_18 : f32 to vector<10x16xf32>
    %41 = arith.mulf %40, %37 : vector<10x16xf32>
    %42 = arith.select %39, %37, %41 : vector<10x16xi1>, vector<10x16xf32>
    %cst_19 = arith.constant dense<0.000000e+00> : vector<10x64xf32>
    %43 = tpu.matmul %42, %13, %cst_19 {dimension_numbers = #tpu.dot_dimension_numbers<[1], [0], [0], [1], [0, 0, 1, 1], [], []>} : vector<10x16xf32>, vector<16x64xf32>, vector<10x64xf32> -> vector<10x64xf32>
    %44 = vector.extract_strided_slice %43 {offsets = [0, 0], sizes = [10, 32], strides = [1, 1]} : vector<10x64xf32> to vector<10x32xf32>
    %cst_20 = arith.constant dense<0.000000e+00> : vector<10x32xf32>
    %45 = tpu.matmul %7, %44, %cst_20 {dimension_numbers = #tpu.dot_dimension_numbers<[1], [0], [0], [1], [0, 0, 1, 1], [], []>} : vector<10x10xf32>, vector<10x32xf32>, vector<10x32xf32> -> vector<10x32xf32>
    %46 = vector.extract_strided_slice %43 {offsets = [0, 32], sizes = [10, 32], strides = [1, 1]} : vector<10x64xf32> to vector<10x32xf32>
    %47 = arith.addf %45, %46 : vector<10x32xf32>
    %48 = vector.broadcast %17 : vector<1x32xf32> to vector<10x32xf32>
    %49 = arith.addf %47, %48 : vector<10x32xf32>
    %cst_21 = arith.constant 0.000000e+00 : f32
    %50 = vector.broadcast %cst_21 : f32 to vector<10x32xf32>
    %51 = arith.cmpf ogt, %49, %50 : vector<10x32xf32>
    %cst_22 = arith.constant 0.00999999977 : f32
    %52 = vector.broadcast %cst_22 : f32 to vector<10x32xf32>
    %53 = arith.mulf %52, %49 : vector<10x32xf32>
    %54 = arith.select %51, %49, %53 : vector<10x32xi1>, vector<10x32xf32>
    %55 = vector.extract_strided_slice %9 {offsets = [0, 0], sizes = [10, 1], strides = [1, 1]} : vector<10x2xf32> to vector<10x1xf32>
    %cst_23 = arith.constant 5.000000e-01 : f32
    %56 = vector.broadcast %cst_23 : f32 to vector<10x1xf32>
    %57 = arith.cmpf ogt, %55, %56 : vector<10x1xf32>
    %cst_24 = arith.constant -1.000000e+30 : f32
    %58 = vector.shape_cast %57 : vector<10x1xi1> to vector<10x1xi1>
    %59 = vector.broadcast %58 : vector<10x1xi1> to vector<10x32xi1>
    %60 = vector.broadcast %cst_24 : f32 to vector<10x32xf32>
    %61 = arith.select %59, %54, %60 : vector<10x32xi1>, vector<10x32xf32>
    %cst_25 = arith.constant dense<0xFF800000> : vector<32xf32>
    %62 = vector.multi_reduction <maximumf>, %61, %cst_25 [0] : vector<10x32xf32> to vector<32xf32>
    %63 = vector.shape_cast %62 : vector<32xf32> to vector<1x32xf32>
    %64 = vector.extract_strided_slice %9 {offsets = [0, 1], sizes = [10, 1], strides = [1, 1]} : vector<10x2xf32> to vector<10x1xf32>
    %cst_26 = arith.constant 5.000000e-01 : f32
    %65 = vector.broadcast %cst_26 : f32 to vector<10x1xf32>
    %66 = arith.cmpf ogt, %64, %65 : vector<10x1xf32>
    %cst_27 = arith.constant -1.000000e+30 : f32
    %67 = vector.shape_cast %66 : vector<10x1xi1> to vector<10x1xi1>
    %68 = vector.broadcast %67 : vector<10x1xi1> to vector<10x32xi1>
    %69 = vector.broadcast %cst_27 : f32 to vector<10x32xf32>
    %70 = arith.select %68, %54, %69 : vector<10x32xi1>, vector<10x32xf32>
    %cst_28 = arith.constant dense<0xFF800000> : vector<32xf32>
    %71 = vector.multi_reduction <maximumf>, %70, %cst_28 [0] : vector<10x32xf32> to vector<32xf32>
    %72 = vector.shape_cast %71 : vector<32xf32> to vector<1x32xf32>
    %73 = tpu.concatenate %63, %72 in 0 : vector<1x32xf32>, vector<1x32xf32> -> vector<2x32xf32>
    %cst_29 = arith.constant dense<0.000000e+00> : vector<2x32xf32>
    %74 = tpu.matmul %73, %14, %cst_29 {dimension_numbers = #tpu.dot_dimension_numbers<[1], [0], [0], [1], [0, 0, 1, 1], [], []>} : vector<2x32xf32>, vector<32x32xf32>, vector<2x32xf32> -> vector<2x32xf32>
    %75 = vector.broadcast %18 : vector<1x32xf32> to vector<2x32xf32>
    %76 = arith.addf %74, %75 : vector<2x32xf32>
    %cst_30 = arith.constant 0.000000e+00 : f32
    %77 = vector.broadcast %cst_30 : f32 to vector<2x32xf32>
    %78 = arith.cmpf ogt, %76, %77 : vector<2x32xf32>
    %cst_31 = arith.constant 0.00999999977 : f32
    %79 = vector.broadcast %cst_31 : f32 to vector<2x32xf32>
    %80 = arith.mulf %79, %76 : vector<2x32xf32>
    %81 = arith.select %78, %76, %80 : vector<2x32xi1>, vector<2x32xf32>
    %c0_32 = arith.constant 0 : index
    %c0_33 = arith.constant 0 : index
    %82 = vector.load %arg5[%c0_32, %c0_33] : memref<22x22xf32, #tpu.memory_space<vmem>>, vector<22x22xf32>
    %c0_34 = arith.constant 0 : index
    %c0_35 = arith.constant 0 : index
    %83 = vector.load %arg6[%c0_34, %c0_35] : memref<22x2xf32, #tpu.memory_space<vmem>>, vector<22x2xf32>
    %c0_36 = arith.constant 0 : index
    %c0_37 = arith.constant 0 : index
    %84 = vector.load %arg8[%c0_36, %c0_37] : memref<188x64xf32, #tpu.memory_space<vmem>>, vector<188x64xf32>
    %85 = vector.extract_strided_slice %84 {offsets = [0, 0], sizes = [128, 16], strides = [1, 1]} : vector<188x64xf32> to vector<128x16xf32>
    %86 = vector.extract_strided_slice %84 {offsets = [128, 0], sizes = [8, 32], strides = [1, 1]} : vector<188x64xf32> to vector<8x32xf32>
    %87 = vector.extract_strided_slice %84 {offsets = [136, 0], sizes = [16, 64], strides = [1, 1]} : vector<188x64xf32> to vector<16x64xf32>
    %88 = vector.extract_strided_slice %84 {offsets = [152, 0], sizes = [32, 32], strides = [1, 1]} : vector<188x64xf32> to vector<32x32xf32>
    %89 = vector.extract_strided_slice %84 {offsets = [184, 0], sizes = [1, 8], strides = [1, 1]} : vector<188x64xf32> to vector<1x8xf32>
    %90 = vector.extract_strided_slice %84 {offsets = [185, 0], sizes = [1, 16], strides = [1, 1]} : vector<188x64xf32> to vector<1x16xf32>
    %91 = vector.extract_strided_slice %84 {offsets = [186, 0], sizes = [1, 32], strides = [1, 1]} : vector<188x64xf32> to vector<1x32xf32>
    %92 = vector.extract_strided_slice %84 {offsets = [187, 0], sizes = [1, 32], strides = [1, 1]} : vector<188x64xf32> to vector<1x32xf32>
    %cst_38 = arith.constant dense<0.000000e+00> : vector<22x16xf32>
    %93 = tpu.matmul %6, %85, %cst_38 {dimension_numbers = #tpu.dot_dimension_numbers<[1], [0], [0], [1], [0, 0, 1, 1], [], []>} : vector<22x128xf32>, vector<128x16xf32>, vector<22x16xf32> -> vector<22x16xf32>
    %94 = vector.extract_strided_slice %93 {offsets = [0, 0], sizes = [22, 8], strides = [1, 1]} : vector<22x16xf32> to vector<22x8xf32>
    %cst_39 = arith.constant dense<0.000000e+00> : vector<22x8xf32>
    %95 = tpu.matmul %82, %94, %cst_39 {dimension_numbers = #tpu.dot_dimension_numbers<[1], [0], [0], [1], [0, 0, 1, 1], [], []>} : vector<22x22xf32>, vector<22x8xf32>, vector<22x8xf32> -> vector<22x8xf32>
    %96 = vector.extract_strided_slice %93 {offsets = [0, 8], sizes = [22, 8], strides = [1, 1]} : vector<22x16xf32> to vector<22x8xf32>
    %97 = arith.addf %95, %96 : vector<22x8xf32>
    %98 = vector.broadcast %89 : vector<1x8xf32> to vector<22x8xf32>
    %99 = arith.addf %97, %98 : vector<22x8xf32>
    %cst_40 = arith.constant 0.000000e+00 : f32
    %100 = vector.broadcast %cst_40 : f32 to vector<22x8xf32>
    %101 = arith.cmpf ogt, %99, %100 : vector<22x8xf32>
    %cst_41 = arith.constant 0.00999999977 : f32
    %102 = vector.broadcast %cst_41 : f32 to vector<22x8xf32>
    %103 = arith.mulf %102, %99 : vector<22x8xf32>
    %104 = arith.select %101, %99, %103 : vector<22x8xi1>, vector<22x8xf32>
    %cst_42 = arith.constant dense<0.000000e+00> : vector<22x32xf32>
    %105 = tpu.matmul %104, %86, %cst_42 {dimension_numbers = #tpu.dot_dimension_numbers<[1], [0], [0], [1], [0, 0, 1, 1], [], []>} : vector<22x8xf32>, vector<8x32xf32>, vector<22x32xf32> -> vector<22x32xf32>
    %106 = vector.extract_strided_slice %105 {offsets = [0, 0], sizes = [22, 16], strides = [1, 1]} : vector<22x32xf32> to vector<22x16xf32>
    %cst_43 = arith.constant dense<0.000000e+00> : vector<22x16xf32>
    %107 = tpu.matmul %82, %106, %cst_43 {dimension_numbers = #tpu.dot_dimension_numbers<[1], [0], [0], [1], [0, 0, 1, 1], [], []>} : vector<22x22xf32>, vector<22x16xf32>, vector<22x16xf32> -> vector<22x16xf32>
    %108 = vector.extract_strided_slice %105 {offsets = [0, 16], sizes = [22, 16], strides = [1, 1]} : vector<22x32xf32> to vector<22x16xf32>
    %109 = arith.addf %107, %108 : vector<22x16xf32>
    %110 = vector.broadcast %90 : vector<1x16xf32> to vector<22x16xf32>
    %111 = arith.addf %109, %110 : vector<22x16xf32>
    %cst_44 = arith.constant 0.000000e+00 : f32
    %112 = vector.broadcast %cst_44 : f32 to vector<22x16xf32>
    %113 = arith.cmpf ogt, %111, %112 : vector<22x16xf32>
    %cst_45 = arith.constant 0.00999999977 : f32
    %114 = vector.broadcast %cst_45 : f32 to vector<22x16xf32>
    %115 = arith.mulf %114, %111 : vector<22x16xf32>
    %116 = arith.select %113, %111, %115 : vector<22x16xi1>, vector<22x16xf32>
    %cst_46 = arith.constant dense<0.000000e+00> : vector<22x64xf32>
    %117 = tpu.matmul %116, %87, %cst_46 {dimension_numbers = #tpu.dot_dimension_numbers<[1], [0], [0], [1], [0, 0, 1, 1], [], []>} : vector<22x16xf32>, vector<16x64xf32>, vector<22x64xf32> -> vector<22x64xf32>
    %118 = vector.extract_strided_slice %117 {offsets = [0, 0], sizes = [22, 32], strides = [1, 1]} : vector<22x64xf32> to vector<22x32xf32>
    %cst_47 = arith.constant dense<0.000000e+00> : vector<22x32xf32>
    %119 = tpu.matmul %82, %118, %cst_47 {dimension_numbers = #tpu.dot_dimension_numbers<[1], [0], [0], [1], [0, 0, 1, 1], [], []>} : vector<22x22xf32>, vector<22x32xf32>, vector<22x32xf32> -> vector<22x32xf32>
    %120 = vector.extract_strided_slice %117 {offsets = [0, 32], sizes = [22, 32], strides = [1, 1]} : vector<22x64xf32> to vector<22x32xf32>
    %121 = arith.addf %119, %120 : vector<22x32xf32>
    %122 = vector.broadcast %91 : vector<1x32xf32> to vector<22x32xf32>
    %123 = arith.addf %121, %122 : vector<22x32xf32>
    %cst_48 = arith.constant 0.000000e+00 : f32
    %124 = vector.broadcast %cst_48 : f32 to vector<22x32xf32>
    %125 = arith.cmpf ogt, %123, %124 : vector<22x32xf32>
    %cst_49 = arith.constant 0.00999999977 : f32
    %126 = vector.broadcast %cst_49 : f32 to vector<22x32xf32>
    %127 = arith.mulf %126, %123 : vector<22x32xf32>
    %128 = arith.select %125, %123, %127 : vector<22x32xi1>, vector<22x32xf32>
    %129 = vector.extract_strided_slice %83 {offsets = [0, 0], sizes = [22, 1], strides = [1, 1]} : vector<22x2xf32> to vector<22x1xf32>
    %cst_50 = arith.constant 5.000000e-01 : f32
    %130 = vector.broadcast %cst_50 : f32 to vector<22x1xf32>
    %131 = arith.cmpf ogt, %129, %130 : vector<22x1xf32>
    %cst_51 = arith.constant -1.000000e+30 : f32
    %132 = vector.shape_cast %131 : vector<22x1xi1> to vector<22x1xi1>
    %133 = vector.broadcast %132 : vector<22x1xi1> to vector<22x32xi1>
    %134 = vector.broadcast %cst_51 : f32 to vector<22x32xf32>
    %135 = arith.select %133, %128, %134 : vector<22x32xi1>, vector<22x32xf32>
    %cst_52 = arith.constant dense<0xFF800000> : vector<32xf32>
    %136 = vector.multi_reduction <maximumf>, %135, %cst_52 [0] : vector<22x32xf32> to vector<32xf32>
    %137 = vector.shape_cast %136 : vector<32xf32> to vector<1x32xf32>
    %138 = vector.extract_strided_slice %83 {offsets = [0, 1], sizes = [22, 1], strides = [1, 1]} : vector<22x2xf32> to vector<22x1xf32>
    %cst_53 = arith.constant 5.000000e-01 : f32
    %139 = vector.broadcast %cst_53 : f32 to vector<22x1xf32>
    %140 = arith.cmpf ogt, %138, %139 : vector<22x1xf32>
    %cst_54 = arith.constant -1.000000e+30 : f32
    %141 = vector.shape_cast %140 : vector<22x1xi1> to vector<22x1xi1>
    %142 = vector.broadcast %141 : vector<22x1xi1> to vector<22x32xi1>
    %143 = vector.broadcast %cst_54 : f32 to vector<22x32xf32>
    %144 = arith.select %142, %128, %143 : vector<22x32xi1>, vector<22x32xf32>
    %cst_55 = arith.constant dense<0xFF800000> : vector<32xf32>
    %145 = vector.multi_reduction <maximumf>, %144, %cst_55 [0] : vector<22x32xf32> to vector<32xf32>
    %146 = vector.shape_cast %145 : vector<32xf32> to vector<1x32xf32>
    %147 = tpu.concatenate %137, %146 in 0 : vector<1x32xf32>, vector<1x32xf32> -> vector<2x32xf32>
    %cst_56 = arith.constant dense<0.000000e+00> : vector<2x32xf32>
    %148 = tpu.matmul %147, %88, %cst_56 {dimension_numbers = #tpu.dot_dimension_numbers<[1], [0], [0], [1], [0, 0, 1, 1], [], []>} : vector<2x32xf32>, vector<32x32xf32>, vector<2x32xf32> -> vector<2x32xf32>
    %149 = vector.broadcast %92 : vector<1x32xf32> to vector<2x32xf32>
    %150 = arith.addf %148, %149 : vector<2x32xf32>
    %cst_57 = arith.constant 0.000000e+00 : f32
    %151 = vector.broadcast %cst_57 : f32 to vector<2x32xf32>
    %152 = arith.cmpf ogt, %150, %151 : vector<2x32xf32>
    %cst_58 = arith.constant 0.00999999977 : f32
    %153 = vector.broadcast %cst_58 : f32 to vector<2x32xf32>
    %154 = arith.mulf %153, %150 : vector<2x32xf32>
    %155 = arith.select %152, %150, %154 : vector<2x32xi1>, vector<2x32xf32>
    %c0_59 = arith.constant 0 : index
    %c0_60 = arith.constant 0 : index
    %156 = vector.load %arg9[%c0_59, %c0_60] : memref<322x256xf32, #tpu.memory_space<vmem>>, vector<322x256xf32>
    %157 = vector.extract_strided_slice %156 {offsets = [0, 0], sizes = [64, 256], strides = [1, 1]} : vector<322x256xf32> to vector<64x256xf32>
    %158 = vector.extract_strided_slice %156 {offsets = [64, 0], sizes = [256, 128], strides = [1, 1]} : vector<322x256xf32> to vector<256x128xf32>
    %159 = vector.extract_strided_slice %156 {offsets = [320, 0], sizes = [1, 256], strides = [1, 1]} : vector<322x256xf32> to vector<1x256xf32>
    %160 = vector.extract_strided_slice %156 {offsets = [321, 0], sizes = [1, 128], strides = [1, 1]} : vector<322x256xf32> to vector<1x128xf32>
    %161 = tpu.concatenate %81, %155 in 1 : vector<2x32xf32>, vector<2x32xf32> -> vector<2x64xf32>
    %cst_61 = arith.constant dense<0.000000e+00> : vector<2x256xf32>
    %162 = tpu.matmul %161, %157, %cst_61 {dimension_numbers = #tpu.dot_dimension_numbers<[1], [0], [0], [1], [0, 0, 1, 1], [], []>} : vector<2x64xf32>, vector<64x256xf32>, vector<2x256xf32> -> vector<2x256xf32>
    %163 = vector.broadcast %159 : vector<1x256xf32> to vector<2x256xf32>
    %164 = arith.addf %162, %163 : vector<2x256xf32>
    %cst_62 = arith.constant 0.000000e+00 : f32
    %165 = vector.broadcast %cst_62 : f32 to vector<2x256xf32>
    %166 = arith.cmpf ogt, %164, %165 : vector<2x256xf32>
    %cst_63 = arith.constant 0.00999999977 : f32
    %167 = vector.broadcast %cst_63 : f32 to vector<2x256xf32>
    %168 = arith.mulf %167, %164 : vector<2x256xf32>
    %169 = arith.select %166, %164, %168 : vector<2x256xi1>, vector<2x256xf32>
    %cst_64 = arith.constant dense<0.000000e+00> : vector<2x128xf32>
    %170 = tpu.matmul %169, %158, %cst_64 {dimension_numbers = #tpu.dot_dimension_numbers<[1], [0], [0], [1], [0, 0, 1, 1], [], []>} : vector<2x256xf32>, vector<256x128xf32>, vector<2x128xf32> -> vector<2x128xf32>
    %171 = vector.broadcast %160 : vector<1x128xf32> to vector<2x128xf32>
    %172 = arith.addf %170, %171 : vector<2x128xf32>
    %c0_65 = arith.constant 0 : index
    %c0_66 = arith.constant 0 : index
    %173 = vector.load %arg10[%c0_65, %c0_66] : memref<2x128xf32, #tpu.memory_space<vmem>>, vector<2x128xf32>
    tpu.vector_store %arg10[%c0_65, %c0_66], %172 {strides = array<i32>} : memref<2x128xf32, #tpu.memory_space<vmem>>, vector<2x128xf32>,
    return
  }
}

</mosaic_0001>

<llo_original>
// kernel: tpu_custom_call.1
$region0: #{tpu_custom_call.1}
  #allocation0 [shape = 'u32[]', space=smem, size = 0x4, offset = 0x4, fixed_abs, tag = 'smem constant byte address 0x4 - core index']
  #allocation1 [shape = 'u32[144,128]{1,0:T(1,128)}', space=vmem, size = 0x12000, scoped, tag = 'internal scratch']
  %s0 = inlined_call_operand.vmem [shape: f32[22,128], index: 0, kind: input, shape index: {}]
  %s1 = inlined_call_operand.vmem [shape: f32[129,128], index: 1, kind: input, shape index: {}]
  %s2 = inlined_call_operand.vmem [shape: f32[10,10], index: 2, kind: input, shape index: {}]
  %s3 = inlined_call_operand.vmem [shape: f32[10,16], index: 3, kind: input, shape index: {}]
  %s4 = inlined_call_operand.vmem [shape: f32[10,2], index: 4, kind: input, shape index: {}]
  %s5 = inlined_call_operand.vmem [shape: f32[22,22], index: 5, kind: input, shape index: {}]
  %s6 = inlined_call_operand.vmem [shape: f32[22,2], index: 6, kind: input, shape index: {}]
  %s7 = inlined_call_operand.vmem [shape: f32[76,64], index: 7, kind: input, shape index: {}]
  %s8 = inlined_call_operand.vmem [shape: f32[188,64], index: 8, kind: input, shape index: {}]
  %s9 = inlined_call_operand.hbm [shape: f32[322,256], index: 9, kind: input, shape index: {}]
  %s10 = inlined_call_operand.hbm [shape: f32[2,128], index: 10, kind: output, shape index: {}]
  %s11 = sld [smem:[#allocation0]]
  $region54: #{tpu_custom_call.1} parent=0
    _
  %s13 = ssub.s32 1, %s11
  %s14 = scalar_select 0, %s13, %s11
  $region1: #{tpu_custom_call.1} parent=0
    #allocation2 [shape = 'u8[335872]{0}', space=vmem, size = 0x52000, scoped, tag = 'input window, operand 9, single buffered']
    #allocation3 [shape = 's32[1]{0}', space=sflag, size = 0x4, scoped, tag = 'scoped memory for tpu_custom_call.1']
    #allocation4 [shape = 's32[1]{0}', space=sflag, size = 0x4, scoped, tag = 'scoped memory for tpu_custom_call.1']
    #allocation5 [shape = 'u8[1024]{0}', space=vmem, size = 0x400, scoped, tag = 'output window, operand 0, single buffered']
    %15 = vsyncpa [#allocation3], 0
    %16 = vsyncpa [#allocation4], 0
    // Predicated region
    $region2: #{tpu_custom_call.1} parent=1 // pred_check
      _
    $region3: #{tpu_custom_call.1} parent=1 // pred_check_branch
      %18 = sbr.rel (0) target = $region5
    $region4: #{tpu_custom_call.1} parent=1 // pred_region
      _
    $region5: #{tpu_custom_call.1} parent=1 // pred_fallthru
      _
    // Predicated region
    $region6: #{tpu_custom_call.1} parent=1 // pred_check
      _
    $region7: #{tpu_custom_call.1} parent=1 // pred_check_branch
      %20 = sbr.rel (0) target = $region9
    $region8: #{tpu_custom_call.1} parent=1 // pred_region
      _
    $region9: #{tpu_custom_call.1} parent=1 // pred_fallthru
      _
    // Predicated region
    $region10: #{tpu_custom_call.1} parent=1 // pred_check
      _
    $region11: #{tpu_custom_call.1} parent=1 // pred_check_branch
      %22 = sbr.rel (0) target = $region13
    $region12: #{tpu_custom_call.1} parent=1 // pred_region
      _
    $region13: #{tpu_custom_call.1} parent=1 // pred_fallthru
      _
    // Predicated region
    $region14: #{tpu_custom_call.1} parent=1 // pred_check
      _
    $region15: #{tpu_custom_call.1} parent=1 // pred_check_branch
      %24 = sbr.rel (0) target = $region17
    $region16: #{tpu_custom_call.1} parent=1 // pred_region
      _
    $region17: #{tpu_custom_call.1} parent=1 // pred_fallthru
      _
    // Predicated region
    $region18: #{tpu_custom_call.1} parent=1 // pred_check
      _
    $region19: #{tpu_custom_call.1} parent=1 // pred_check_branch
      %26 = sbr.rel (0) target = $region21
    $region20: #{tpu_custom_call.1} parent=1 // pred_region
      _
    $region21: #{tpu_custom_call.1} parent=1 // pred_fallthru
      _
    // Predicated region
    $region22: #{tpu_custom_call.1} parent=1 // pred_check
      _
    $region23: #{tpu_custom_call.1} parent=1 // pred_check_branch
      %28 = sbr.rel (0) target = $region25
    $region24: #{tpu_custom_call.1} parent=1 // pred_region
      _
    $region25: #{tpu_custom_call.1} parent=1 // pred_fallthru
      _
    // Predicated region
    $region26: #{tpu_custom_call.1} parent=1 // pred_check
      _
    $region27: #{tpu_custom_call.1} parent=1 // pred_check_branch
      %30 = sbr.rel (0) target = $region29
    $region28: #{tpu_custom_call.1} parent=1 // pred_region
      _
    $region29: #{tpu_custom_call.1} parent=1 // pred_fallthru
      _
    // Predicated region
    $region30: #{tpu_custom_call.1} parent=1 // pred_check
      _
    $region31: #{tpu_custom_call.1} parent=1 // pred_check_branch
      %32 = sbr.rel (0) target = $region33
    $region32: #{tpu_custom_call.1} parent=1 // pred_region
      _
    $region33: #{tpu_custom_call.1} parent=1 // pred_fallthru
      _
    // Predicated region
    $region34: #{tpu_custom_call.1} parent=1 // pred_check
      _
    $region35: #{tpu_custom_call.1} parent=1 // pred_check_branch
      %34 = sbr.rel (0) target = $region37
    $region36: #{tpu_custom_call.1} parent=1 // pred_region
      _
    $region37: #{tpu_custom_call.1} parent=1 // pred_fallthru
      _
    // Predicated region
    $region38: #{tpu_custom_call.1} parent=1 // pred_check
      _
    $region39: #{tpu_custom_call.1} parent=1 // pred_check_branch
      %36 = sbr.rel (0) target = $region41
    $region40: #{tpu_custom_call.1} parent=1 // pred_region
      %s38 = ssub.s32 10496, 10496
      %39 = vsyncadd [#allocation3], %s38
      %s40 = sshll.u32 [#allocation2], 4
      %s41 = int_to_ptr.vmem [resolvable:$true] %s40
      %46 = dma.hbm_to_vmem [thread:$0]  %s9, 10496, %s41, [#allocation3], 256, 256, 16
    $region41: #{tpu_custom_call.1} parent=1 // pred_fallthru
      _
    // Predicated region
    $region42: #{tpu_custom_call.1} parent=1 // pred_check
      _
    $region43: #{tpu_custom_call.1} parent=1 // pred_check_branch
      %48 = sbr.rel (0) target = $region45
    $region44: #{tpu_custom_call.1} parent=1 // pred_region
      %49 = dma.done [#allocation3], 10496
    $region45: #{tpu_custom_call.1} parent=1 // pred_fallthru
      _
    %v50 = vld [vmem:[%s1] sm:$0xff]
    %v51 = vld [vmem:[%s1 + $0x8] sm:$0xff]
    %v52 = vld [vmem:[%s1 + $0x10] sm:$0xff]
    %v53 = vld [vmem:[%s1 + $0x18] sm:$0xff]
    %v54 = vld [vmem:[%s1 + $0x20] sm:$0xff]
    %v55 = vld [vmem:[%s1 + $0x28] sm:$0xff]
    %v56 = vld [vmem:[%s1 + $0x30] sm:$0xff]
    %v57 = vld [vmem:[%s1 + $0x38] sm:$0xff]
    %v58 = vld [vmem:[%s1 + $0x40] sm:$0xff]
    %v59 = vld [vmem:[%s1 + $0x48] sm:$0xff]
    %v60 = vld [vmem:[%s1 + $0x50] sm:$0xff]
    %v61 = vld [vmem:[%s1 + $0x58] sm:$0xff]
    %v62 = vld [vmem:[%s1 + $0x60] sm:$0xff]
    %v63 = vld [vmem:[%s1 + $0x68] sm:$0xff]
    %v64 = vld [vmem:[%s1 + $0x70] sm:$0xff]
    %v65 = vld [vmem:[%s1 + $0x78] sm:$0xff]
    %v66 = vld [vmem:[%s1 + $0x80] sm:$0x1]
    %v67 = vld [vmem:[%s0] sm:$0xff]
    %v68 = vld [vmem:[%s0 + $0x8] sm:$0xff]
    %v69 = vld [vmem:[%s0 + $0x10] sm:$0x3f]
    %v70 = vlaneseq
    %v71 = vshrl.u32 %v70, 7
    %v72 = vsub.s32 0, %v71
    %v73 = vrot.slane %v66, %v72
    %74 = vmatprep.subr.mxu0 0.0
    %75 = vmatpush1.msra.mxu0 %v50
    %76 = vmatprep.subr.mxu0 0.0
    %77 = vmatpush1.msra.mxu0 %v51
    %78 = vmatprep.subr.mxu0 0.0
    %79 = vmatpush1.msra.mxu0 %v52
    %80 = vmatprep.subr.mxu0 0.0
    %81 = vmatpush1.msra.mxu0 %v53
    %82 = vmatprep.subr.mxu0 0.0
    %83 = vmatpush1.msra.mxu0 %v54
    %84 = vmatprep.subr.mxu0 0.0
    %85 = vmatpush1.msra.mxu0 %v55
    %86 = vmatprep.subr.mxu0 0.0
    %87 = vmatpush1.msra.mxu0 %v56
    %88 = vmatprep.subr.mxu0 0.0
    %89 = vmatpush1.msra.mxu0 %v57
    %90 = vmatprep.subr.mxu0 0.0
    %91 = vmatpush1.msra.mxu0 %v58
    %92 = vmatprep.subr.mxu0 0.0
    %93 = vmatpush1.msra.mxu0 %v59
    %94 = vmatprep.subr.mxu0 0.0
    %95 = vmatpush1.msra.mxu0 %v60
    %96 = vmatprep.subr.mxu0 0.0
    %97 = vmatpush1.msra.mxu0 %v61
    %98 = vmatprep.subr.mxu0 0.0
    %99 = vmatpush1.msra.mxu0 %v62
    %100 = vmatprep.subr.mxu0 0.0
    %101 = vmatpush1.msra.mxu0 %v63
    %102 = vmatprep.subr.mxu0 0.0
    %103 = vmatpush1.msra.mxu0 %v64
    %104 = vmatprep.subr.mxu0 0.0
    %105 = vmatpush1.msra.mxu0 %v65
    %106 = vmatprep.subr.mxu0 0.0
    %107 = vmatpush1.msra.mxu0 0.0
    %108 = vmatprep.subr.mxu0 0.0
    %109 = vmatpush1.msra.mxu0 0.0
    %110 = vmatprep.subr.mxu0 0.0
    %111 = vmatpush1.msra.mxu0 0.0
    %112 = vmatprep.subr.mxu0 0.0
    %113 = vmatpush1.msra.mxu0 0.0
    %114 = vmatprep.subr.mxu0 0.0
    %115 = vmatpush1.msra.mxu0 0.0
    %116 = vmatprep.subr.mxu0 0.0
    %117 = vmatpush1.msra.mxu0 0.0
    %118 = vmatprep.subr.mxu0 0.0
    %119 = vmatpush1.msra.mxu0 0.0
    %120 = vmatprep.subr.mxu0 0.0
    %121 = vmatpush1.msra.mxu0 0.0
    %122 = vmatprep.subr.mxu0 0.0
    %123 = vmatpush1.msra.mxu0 0.0
    %124 = vmatprep.subr.mxu0 0.0
    %125 = vmatpush1.msra.mxu0 0.0
    %126 = vmatprep.subr.mxu0 0.0
    %127 = vmatpush1.msra.mxu0 0.0
    %128 = vmatprep.subr.mxu0 0.0
    %129 = vmatpush1.msra.mxu0 0.0
    %130 = vmatprep.subr.mxu0 0.0
    %131 = vmatpush1.msra.mxu0 0.0
    %132 = vmatprep.subr.mxu0 0.0
    %133 = vmatpush1.msra.mxu0 0.0
    %134 = vmatprep.subr.mxu0 0.0
    %135 = vmatpush1.msra.mxu0 0.0
    %136 = vmatprep.subr.mxu0 0.0
    %137 = vmatpush1.msra.mxu0 0.0
    %138 = vmatprep.mubr.f32.mxu0 0.0
    %139 = vmatmul.mubr.f32.gmra.mrb[0].mxu0 %v67
    %v140 = vpop.f32.mrb[0].mxu0
    %v141 = vadd.f32 %v73, %v140
    %v142 = vpop.f32.mrb[0].mxu0
    %143 = vmatprep.mubr.f32.mxu0 0.0
    %144 = vmatmul.mubr.f32.gmra.mrb[0].mxu0 %v68
    %v145 = vpop.f32.mrb[0].mxu0
    %v146 = vadd.f32 %v73, %v145
    %v147 = vpop.f32.mrb[0].mxu0
    %148 = vmatprep.mubr.f32.mxu0 0.0
    %149 = vmatmul.mubr.f32.gmra.mrb[0].mxu0 %v69
    %v150 = vpop.f32.mrb[0].mxu0
    %v151 = vadd.f32 %v73, %v150
    %v152 = vpop.f32.mrb[0].mxu0
    %153 = vdwg.mxu0
    %v154 = vld [vmem:[%s2] sm:$0xff]
    %v155 = vld [vmem:[%s2 + $0x8] sm:$0x3]
    %v156 = vld [vmem:[%s3] sm:$0xff]
    %v157 = vld [vmem:[%s3 + $0x8] sm:$0x3]
    %v158 = vld [vmem:[%s4] sm:$0xff]
    %v159 = vld [vmem:[%s4 + $0x8] sm:$0x3]
    %v160 = vld [vmem:[%s7] sm:$0xff]
    %v161 = vld [vmem:[%s7 + $0x8] sm:$0xff]
    %v162 = vld [vmem:[%s7 + $0x10] sm:$0xff]
    %v163 = vld [vmem:[%s7 + $0x18] sm:$0xff]
    %v164 = vld [vmem:[%s7 + $0x20] sm:$0xff]
    %v165 = vld [vmem:[%s7 + $0x28] sm:$0xff]
    %v166 = vld [vmem:[%s7 + $0x30] sm:$0xff]
    %v167 = vld [vmem:[%s7 + $0x38] sm:$0xff]
    %v168 = vld [vmem:[%s7 + $0x40] sm:$0xff]
    %v169 = vld [vmem:[%s7 + $0x48] sm:$0xf]
    %vm170 = vcmask 130048
    %v172 = vsel %vm170, %v156, 0
    %v175 = vsel %vm170, %v157, 0
    %177 = vmatprep.subr.mxu0 0.0
    %178 = vmatpush1.msra.mxu0 %v160
    %179 = vmatprep.subr.mxu0 0.0
    %180 = vmatpush1.msra.mxu0 %v161
    %181 = vmatprep.subr.mxu0 0.0
    %182 = vmatpush1.msra.mxu0 0.0
    %183 = vmatprep.subr.mxu0 0.0
    %184 = vmatpush1.msra.mxu0 0.0
    %185 = vmatprep.subr.mxu0 0.0
    %186 = vmatpush1.msra.mxu0 0.0
    %187 = vmatprep.subr.mxu0 0.0
    %188 = vmatpush1.msra.mxu0 0.0
    %189 = vmatprep.subr.mxu0 0.0
    %190 = vmatpush1.msra.mxu0 0.0
    %191 = vmatprep.subr.mxu0 0.0
    %192 = vmatpush1.msra.mxu0 0.0
    %193 = vmatprep.subr.mxu0 0.0
    %194 = vmatpush1.msra.mxu0 0.0
    %195 = vmatprep.subr.mxu0 0.0
    %196 = vmatpush1.msra.mxu0 0.0
    %197 = vmatprep.subr.mxu0 0.0
    %198 = vmatpush1.msra.mxu0 0.0
    %199 = vmatprep.subr.mxu0 0.0
    %200 = vmatpush1.msra.mxu0 0.0
    %201 = vmatprep.subr.mxu0 0.0
    %202 = vmatpush1.msra.mxu0 0.0
    %203 = vmatprep.subr.mxu0 0.0
    %204 = vmatpush1.msra.mxu0 0.0
    %205 = vmatprep.subr.mxu0 0.0
    %206 = vmatpush1.msra.mxu0 0.0
    %207 = vmatprep.subr.mxu0 0.0
    %208 = vmatpush1.msra.mxu0 0.0
    %209 = vmatprep.subr.mxu0 0.0
    %210 = vmatpush1.msra.mxu0 0.0
    %211 = vmatprep.subr.mxu0 0.0
    %212 = vmatpush1.msra.mxu0 0.0
    %213 = vmatprep.subr.mxu0 0.0
    %214 = vmatpush1.msra.mxu0 0.0
    %215 = vmatprep.subr.mxu0 0.0
    %216 = vmatpush1.msra.mxu0 0.0
    %217 = vmatprep.subr.mxu0 0.0
    %218 = vmatpush1.msra.mxu0 0.0
    %219 = vmatprep.subr.mxu0 0.0
    %220 = vmatpush1.msra.mxu0 0.0
    %221 = vmatprep.subr.mxu0 0.0
    %222 = vmatpush1.msra.mxu0 0.0
    %223 = vmatprep.subr.mxu0 0.0
    %224 = vmatpush1.msra.mxu0 0.0
    %225 = vmatprep.subr.mxu0 0.0
    %226 = vmatpush1.msra.mxu0 0.0
    %227 = vmatprep.subr.mxu0 0.0
    %228 = vmatpush1.msra.mxu0 0.0
    %229 = vmatprep.subr.mxu0 0.0
    %230 = vmatpush1.msra.mxu0 0.0
    %231 = vmatprep.subr.mxu0 0.0
    %232 = vmatpush1.msra.mxu0 0.0
    %233 = vmatprep.subr.mxu0 0.0
    %234 = vmatpush1.msra.mxu0 0.0
    %235 = vmatprep.subr.mxu0 0.0
    %236 = vmatpush1.msra.mxu0 0.0
    %237 = vmatprep.subr.mxu0 0.0
    %238 = vmatpush1.msra.mxu0 0.0
    %239 = vmatprep.subr.mxu0 0.0
    %240 = vmatpush1.msra.mxu0 0.0
    %241 = vmatprep.mubr.f32.mxu0 0.0
    %242 = vmatmul.mubr.f32.gmra.mrb[0].mxu0 %v172
    %v243 = vpop.f32.mrb[0].mxu0
    %v244 = vadd.f32 0.0, %v243
    %v245 = vpop.f32.mrb[0].mxu0
    %246 = vmatprep.mubr.f32.mxu0 0.0
    %247 = vmatmul.mubr.f32.gmra.mrb[0].mxu0 %v175
    %v248 = vpop.f32.mrb[0].mxu0
    %v249 = vadd.f32 0.0, %v248
    %v250 = vpop.f32.mrb[0].mxu0
    %251 = vdwg.mxu0
    %254 = vrot.lane.b32.xlu0 %v244, 120
    %v255 = vpop.permute.xlu0 %254
    %256 = vrot.lane.b32.xlu0 %v249, 120
    %v257 = vpop.permute.xlu0 %256
    %vm260 = vcmask 80896
    %v262 = vsel %vm260, %v154, 0
    %v265 = vsel %vm260, %v155, 0
    %vm267 = vcmask 1041408
    %v268 = vsel %vm267, %v249, 0
    %270 = vmatprep.subr.mxu0 0.0
    %271 = vmatpush1.msra.mxu0 %v244
    %272 = vmatprep.subr.mxu0 0.0
    %273 = vmatpush1.msra.mxu0 %v268
    %274 = vmatprep.subr.mxu0 0.0
    %275 = vmatpush1.msra.mxu0 0.0
    %276 = vmatprep.subr.mxu0 0.0
    %277 = vmatpush1.msra.mxu0 0.0
    %278 = vmatprep.subr.mxu0 0.0
    %279 = vmatpush1.msra.mxu0 0.0
    %280 = vmatprep.subr.mxu0 0.0
    %281 = vmatpush1.msra.mxu0 0.0
    %282 = vmatprep.subr.mxu0 0.0
    %283 = vmatpush1.msra.mxu0 0.0
    %284 = vmatprep.subr.mxu0 0.0
    %285 = vmatpush1.msra.mxu0 0.0
    %286 = vmatprep.subr.mxu0 0.0
    %287 = vmatpush1.msra.mxu0 0.0
    %288 = vmatprep.subr.mxu0 0.0
    %289 = vmatpush1.msra.mxu0 0.0
    %290 = vmatprep.subr.mxu0 0.0
    %291 = vmatpush1.msra.mxu0 0.0
    %292 = vmatprep.subr.mxu0 0.0
    %293 = vmatpush1.msra.mxu0 0.0
    %294 = vmatprep.subr.mxu0 0.0
    %295 = vmatpush1.msra.mxu0 0.0
    %296 = vmatprep.subr.mxu0 0.0
    %297 = vmatpush1.msra.mxu0 0.0
    %298 = vmatprep.subr.mxu0 0.0
    %299 = vmatpush1.msra.mxu0 0.0
    %300 = vmatprep.subr.mxu0 0.0
    %301 = vmatpush1.msra.mxu0 0.0
    %302 = vmatprep.subr.mxu0 0.0
    %303 = vmatpush1.msra.mxu0 0.0
    %304 = vmatprep.subr.mxu0 0.0
    %305 = vmatpush1.msra.mxu0 0.0
    %306 = vmatprep.subr.mxu0 0.0
    %307 = vmatpush1.msra.mxu0 0.0
    %308 = vmatprep.subr.mxu0 0.0
    %309 = vmatpush1.msra.mxu0 0.0
    %310 = vmatprep.subr.mxu0 0.0
    %311 = vmatpush1.msra.mxu0 0.0
    %312 = vmatprep.subr.mxu0 0.0
    %313 = vmatpush1.msra.mxu0 0.0
    %314 = vmatprep.subr.mxu0 0.0
    %315 = vmatpush1.msra.mxu0 0.0
    %316 = vmatprep.subr.mxu0 0.0
    %317 = vmatpush1.msra.mxu0 0.0
    %318 = vmatprep.subr.mxu0 0.0
    %319 = vmatpush1.msra.mxu0 0.0
    %320 = vmatprep.subr.mxu0 0.0
    %321 = vmatpush1.msra.mxu0 0.0
    %322 = vmatprep.subr.mxu0 0.0
    %323 = vmatpush1.msra.mxu0 0.0
    %324 = vmatprep.subr.mxu0 0.0
    %325 = vmatpush1.msra.mxu0 0.0
    %326 = vmatprep.subr.mxu0 0.0
    %327 = vmatpush1.msra.mxu0 0.0
    %328 = vmatprep.subr.mxu0 0.0
    %329 = vmatpush1.msra.mxu0 0.0
    %330 = vmatprep.subr.mxu0 0.0
    %331 = vmatpush1.msra.mxu0 0.0
    %332 = vmatprep.subr.mxu0 0.0
    %333 = vmatpush1.msra.mxu0 0.0
    %334 = vmatprep.mubr.f32.mxu0 0.0
    %335 = vmatmul.mubr.f32.gmra.mrb[0].mxu0 %v262
    %v336 = vpop.f32.mrb[0].mxu0
    %v337 = vadd.f32 %v255, %v336
    %v338 = vpop.f32.mrb[0].mxu0
    %339 = vmatprep.mubr.f32.mxu0 0.0
    %340 = vmatmul.mubr.f32.gmra.mrb[0].mxu0 %v265
    %v341 = vpop.f32.mrb[0].mxu0
    %v342 = vadd.f32 %v257, %v341
    %v343 = vpop.f32.mrb[0].mxu0
    %344 = vdwg.mxu0
    %v345 = vlaneseq
    %v346 = vshrl.u32 %v345, 7
    %v347 = vsub.s32 0, %v346
    %v348 = vrot.slane %v169, %v347
    %v349 = vadd.f32 %v337, %v348
    %v350 = vadd.f32 %v342, %v348
    %vm351 = vcmp.gt.f32.partialorder %v349, 0.0
    %vm352 = vcmp.gt.f32.partialorder %v350, 0.0
    %v353 = vmul.f32 %v349, 0.01
    %v354 = vmul.f32 %v350, 0.01
    %v355 = vsel %vm351, %v349, %v353
    %v356 = vsel %vm352, %v350, %v354
    %vm357 = vcmask 64512
    %v359 = vsel %vm357, %v355, 0
    %v362 = vsel %vm357, %v356, 0
    %364 = vmatprep.subr.mxu0 0.0
    %365 = vmatpush1.msra.mxu0 %v162
    %366 = vmatprep.subr.mxu0 0.0
    %367 = vmatpush1.msra.mxu0 0.0
    %368 = vmatprep.subr.mxu0 0.0
    %369 = vmatpush1.msra.mxu0 0.0
    %370 = vmatprep.subr.mxu0 0.0
    %371 = vmatpush1.msra.mxu0 0.0
    %372 = vmatprep.subr.mxu0 0.0
    %373 = vmatpush1.msra.mxu0 0.0
    %374 = vmatprep.subr.mxu0 0.0
    %375 = vmatpush1.msra.mxu0 0.0
    %376 = vmatprep.subr.mxu0 0.0
    %377 = vmatpush1.msra.mxu0 0.0
    %378 = vmatprep.subr.mxu0 0.0
    %379 = vmatpush1.msra.mxu0 0.0
    %380 = vmatprep.subr.mxu0 0.0
    %381 = vmatpush1.msra.mxu0 0.0
    %382 = vmatprep.subr.mxu0 0.0
    %383 = vmatpush1.msra.mxu0 0.0
    %384 = vmatprep.subr.mxu0 0.0
    %385 = vmatpush1.msra.mxu0 0.0
    %386 = vmatprep.subr.mxu0 0.0
    %387 = vmatpush1.msra.mxu0 0.0
    %388 = vmatprep.subr.mxu0 0.0
    %389 = vmatpush1.msra.mxu0 0.0
    %390 = vmatprep.subr.mxu0 0.0
    %391 = vmatpush1.msra.mxu0 0.0
    %392 = vmatprep.subr.mxu0 0.0
    %393 = vmatpush1.msra.mxu0 0.0
    %394 = vmatprep.subr.mxu0 0.0
    %395 = vmatpush1.msra.mxu0 0.0
    %396 = vmatprep.subr.mxu0 0.0
    %397 = vmatpush1.msra.mxu0 0.0
    %398 = vmatprep.subr.mxu0 0.0
    %399 = vmatpush1.msra.mxu0 0.0
    %400 = vmatprep.subr.mxu0 0.0
    %401 = vmatpush1.msra.mxu0 0.0
    %402 = vmatprep.subr.mxu0 0.0
    %403 = vmatpush1.msra.mxu0 0.0
    %404 = vmatprep.subr.mxu0 0.0
    %405 = vmatpush1.msra.mxu0 0.0
    %406 = vmatprep.subr.mxu0 0.0
    %407 = vmatpush1.msra.mxu0 0.0
    %408 = vmatprep.subr.mxu0 0.0
    %409 = vmatpush1.msra.mxu0 0.0
    %410 = vmatprep.subr.mxu0 0.0
    %411 = vmatpush1.msra.mxu0 0.0
    %412 = vmatprep.subr.mxu0 0.0
    %413 = vmatpush1.msra.mxu0 0.0
    %414 = vmatprep.subr.mxu0 0.0
    %415 = vmatpush1.msra.mxu0 0.0
    %416 = vmatprep.subr.mxu0 0.0
    %417 = vmatpush1.msra.mxu0 0.0
    %418 = vmatprep.subr.mxu0 0.0
    %419 = vmatpush1.msra.mxu0 0.0
    %420 = vmatprep.subr.mxu0 0.0
    %421 = vmatpush1.msra.mxu0 0.0
    %422 = vmatprep.subr.mxu0 0.0
    %423 = vmatpush1.msra.mxu0 0.0
    %424 = vmatprep.subr.mxu0 0.0
    %425 = vmatpush1.msra.mxu0 0.0
    %426 = vmatprep.subr.mxu0 0.0
    %427 = vmatpush1.msra.mxu0 0.0
    %428 = vmatprep.mubr.f32.mxu0 0.0
    %429 = vmatmul.mubr.f32.gmra.mrb[0].mxu0 %v359
    %v430 = vpop.f32.mrb[0].mxu0
    %v431 = vadd.f32 0.0, %v430
    %v432 = vpop.f32.mrb[0].mxu0
    %433 = vmatprep.mubr.f32.mxu0 0.0
    %434 = vmatmul.mubr.f32.gmra.mrb[0].mxu0 %v362
    %v435 = vpop.f32.mrb[0].mxu0
    %v436 = vadd.f32 0.0, %v435
    %v437 = vpop.f32.mrb[0].mxu0
    %438 = vdwg.mxu0
    %441 = vrot.lane.b32.xlu0 %v431, 112
    %v442 = vpop.permute.xlu0 %441
    %443 = vrot.lane.b32.xlu0 %v436, 112
    %v444 = vpop.permute.xlu0 %443
    %v447 = vsel %vm267, %v436, 0
    %449 = vmatprep.subr.mxu0 0.0
    %450 = vmatpush1.msra.mxu0 %v431
    %451 = vmatprep.subr.mxu0 0.0
    %452 = vmatpush1.msra.mxu0 %v447
    %453 = vmatprep.subr.mxu0 0.0
    %454 = vmatpush1.msra.mxu0 0.0
    %455 = vmatprep.subr.mxu0 0.0
    %456 = vmatpush1.msra.mxu0 0.0
    %457 = vmatprep.subr.mxu0 0.0
    %458 = vmatpush1.msra.mxu0 0.0
    %459 = vmatprep.subr.mxu0 0.0
    %460 = vmatpush1.msra.mxu0 0.0
    %461 = vmatprep.subr.mxu0 0.0
    %462 = vmatpush1.msra.mxu0 0.0
    %463 = vmatprep.subr.mxu0 0.0
    %464 = vmatpush1.msra.mxu0 0.0
    %465 = vmatprep.subr.mxu0 0.0
    %466 = vmatpush1.msra.mxu0 0.0
    %467 = vmatprep.subr.mxu0 0.0
    %468 = vmatpush1.msra.mxu0 0.0
    %469 = vmatprep.subr.mxu0 0.0
    %470 = vmatpush1.msra.mxu0 0.0
    %471 = vmatprep.subr.mxu0 0.0
    %472 = vmatpush1.msra.mxu0 0.0
    %473 = vmatprep.subr.mxu0 0.0
    %474 = vmatpush1.msra.mxu0 0.0
    %475 = vmatprep.subr.mxu0 0.0
    %476 = vmatpush1.msra.mxu0 0.0
    %477 = vmatprep.subr.mxu0 0.0
    %478 = vmatpush1.msra.mxu0 0.0
    %479 = vmatprep.subr.mxu0 0.0
    %480 = vmatpush1.msra.mxu0 0.0
    %481 = vmatprep.subr.mxu0 0.0
    %482 = vmatpush1.msra.mxu0 0.0
    %483 = vmatprep.subr.mxu0 0.0
    %484 = vmatpush1.msra.mxu0 0.0
    %485 = vmatprep.subr.mxu0 0.0
    %486 = vmatpush1.msra.mxu0 0.0
    %487 = vmatprep.subr.mxu0 0.0
    %488 = vmatpush1.msra.mxu0 0.0
    %489 = vmatprep.subr.mxu0 0.0
    %490 = vmatpush1.msra.mxu0 0.0
    %491 = vmatprep.subr.mxu0 0.0
    %492 = vmatpush1.msra.mxu0 0.0
    %493 = vmatprep.subr.mxu0 0.0
    %494 = vmatpush1.msra.mxu0 0.0
    %495 = vmatprep.subr.mxu0 0.0
    %496 = vmatpush1.msra.mxu0 0.0
    %497 = vmatprep.subr.mxu0 0.0
    %498 = vmatpush1.msra.mxu0 0.0
    %499 = vmatprep.subr.mxu0 0.0
    %500 = vmatpush1.msra.mxu0 0.0
    %501 = vmatprep.subr.mxu0 0.0
    %502 = vmatpush1.msra.mxu0 0.0
    %503 = vmatprep.subr.mxu0 0.0
    %504 = vmatpush1.msra.mxu0 0.0
    %505 = vmatprep.subr.mxu0 0.0
    %506 = vmatpush1.msra.mxu0 0.0
    %507 = vmatprep.subr.mxu0 0.0
    %508 = vmatpush1.msra.mxu0 0.0
    %509 = vmatprep.subr.mxu0 0.0
    %510 = vmatpush1.msra.mxu0 0.0
    %511 = vmatprep.subr.mxu0 0.0
    %512 = vmatpush1.msra.mxu0 0.0
    %513 = vmatprep.mubr.f32.mxu0 0.0
    %514 = vmatmul.mubr.f32.gmra.mrb[0].mxu0 %v262
    %v515 = vpop.f32.mrb[0].mxu0
    %v516 = vadd.f32 %v442, %v515
    %v517 = vpop.f32.mrb[0].mxu0
    %518 = vmatprep.mubr.f32.mxu0 0.0
    %519 = vmatmul.mubr.f32.gmra.mrb[0].mxu0 %v265
    %v520 = vpop.f32.mrb[0].mxu0
    %v521 = vadd.f32 %v444, %v520
    %v522 = vpop.f32.mrb[0].mxu0
    %523 = vdwg.mxu0
    %v524 = vlaneseq
    %v525 = vshrl.u32 %v524, 7
    %v526 = vsub.s32 1, %v525
    %v527 = vrot.slane %v169, %v526
    %v528 = vadd.f32 %v516, %v527
    %v529 = vadd.f32 %v521, %v527
    %vm530 = vcmp.gt.f32.partialorder %v528, 0.0
    %vm531 = vcmp.gt.f32.partialorder %v529, 0.0
    %v532 = vmul.f32 %v528, 0.01
    %v533 = vmul.f32 %v529, 0.01
    %v534 = vsel %vm530, %v528, %v532
    %v535 = vsel %vm531, %v529, %v533
    %v537 = vsel %vm170, %v534, 0
    %v540 = vsel %vm170, %v535, 0
    %542 = vmatprep.subr.mxu0 0.0
    %543 = vmatpush1.msra.mxu0 %v163
    %544 = vmatprep.subr.mxu0 0.0
    %545 = vmatpush1.msra.mxu0 %v164
    %546 = vmatprep.subr.mxu0 0.0
    %547 = vmatpush1.msra.mxu0 0.0
    %548 = vmatprep.subr.mxu0 0.0
    %549 = vmatpush1.msra.mxu0 0.0
    %550 = vmatprep.subr.mxu0 0.0
    %551 = vmatpush1.msra.mxu0 0.0
    %552 = vmatprep.subr.mxu0 0.0
    %553 = vmatpush1.msra.mxu0 0.0
    %554 = vmatprep.subr.mxu0 0.0
    %555 = vmatpush1.msra.mxu0 0.0
    %556 = vmatprep.subr.mxu0 0.0
    %557 = vmatpush1.msra.mxu0 0.0
    %558 = vmatprep.subr.mxu0 0.0
    %559 = vmatpush1.msra.mxu0 0.0
    %560 = vmatprep.subr.mxu0 0.0
    %561 = vmatpush1.msra.mxu0 0.0
    %562 = vmatprep.subr.mxu0 0.0
    %563 = vmatpush1.msra.mxu0 0.0
    %564 = vmatprep.subr.mxu0 0.0
    %565 = vmatpush1.msra.mxu0 0.0
    %566 = vmatprep.subr.mxu0 0.0
    %567 = vmatpush1.msra.mxu0 0.0
    %568 = vmatprep.subr.mxu0 0.0
    %569 = vmatpush1.msra.mxu0 0.0
    %570 = vmatprep.subr.mxu0 0.0
    %571 = vmatpush1.msra.mxu0 0.0
    %572 = vmatprep.subr.mxu0 0.0
    %573 = vmatpush1.msra.mxu0 0.0
    %574 = vmatprep.subr.mxu0 0.0
    %575 = vmatpush1.msra.mxu0 0.0
    %576 = vmatprep.subr.mxu0 0.0
    %577 = vmatpush1.msra.mxu0 0.0
    %578 = vmatprep.subr.mxu0 0.0
    %579 = vmatpush1.msra.mxu0 0.0
    %580 = vmatprep.subr.mxu0 0.0
    %581 = vmatpush1.msra.mxu0 0.0
    %582 = vmatprep.subr.mxu0 0.0
    %583 = vmatpush1.msra.mxu0 0.0
    %584 = vmatprep.subr.mxu0 0.0
    %585 = vmatpush1.msra.mxu0 0.0
    %586 = vmatprep.subr.mxu0 0.0
    %587 = vmatpush1.msra.mxu0 0.0
    %588 = vmatprep.subr.mxu0 0.0
    %589 = vmatpush1.msra.mxu0 0.0
    %590 = vmatprep.subr.mxu0 0.0
    %591 = vmatpush1.msra.mxu0 0.0
    %592 = vmatprep.subr.mxu0 0.0
    %593 = vmatpush1.msra.mxu0 0.0
    %594 = vmatprep.subr.mxu0 0.0
    %595 = vmatpush1.msra.mxu0 0.0
    %596 = vmatprep.subr.mxu0 0.0
    %597 = vmatpush1.msra.mxu0 0.0
    %598 = vmatprep.subr.mxu0 0.0
    %599 = vmatpush1.msra.mxu0 0.0
    %600 = vmatprep.subr.mxu0 0.0
    %601 = vmatpush1.msra.mxu0 0.0
    %602 = vmatprep.subr.mxu0 0.0
    %603 = vmatpush1.msra.mxu0 0.0
    %604 = vmatprep.subr.mxu0 0.0
    %605 = vmatpush1.msra.mxu0 0.0
    %606 = vmatprep.mubr.f32.mxu0 0.0
    %607 = vmatmul.mubr.f32.gmra.mrb[0].mxu0 %v537
    %v608 = vpop.f32.mrb[0].mxu0
    %v609 = vadd.f32 0.0, %v608
    %v610 = vpop.f32.mrb[0].mxu0
    %611 = vmatprep.mubr.f32.mxu0 0.0
    %612 = vmatmul.mubr.f32.gmra.mrb[0].mxu0 %v540
    %v613 = vpop.f32.mrb[0].mxu0
    %v614 = vadd.f32 0.0, %v613
    %v615 = vpop.f32.mrb[0].mxu0
    %616 = vdwg.mxu0
    %619 = vrot.lane.b32.xlu0 %v609, 96
    %v620 = vpop.permute.xlu0 %619
    %621 = vrot.lane.b32.xlu0 %v614, 96
    %v622 = vpop.permute.xlu0 %621
    %v625 = vsel %vm267, %v614, 0
    %627 = vmatprep.subr.mxu0 0.0
    %628 = vmatpush1.msra.mxu0 %v609
    %629 = vmatprep.subr.mxu0 0.0
    %630 = vmatpush1.msra.mxu0 %v625
    %631 = vmatprep.subr.mxu0 0.0
    %632 = vmatpush1.msra.mxu0 0.0
    %633 = vmatprep.subr.mxu0 0.0
    %634 = vmatpush1.msra.mxu0 0.0
    %635 = vmatprep.subr.mxu0 0.0
    %636 = vmatpush1.msra.mxu0 0.0
    %637 = vmatprep.subr.mxu0 0.0
    %638 = vmatpush1.msra.mxu0 0.0
    %639 = vmatprep.subr.mxu0 0.0
    %640 = vmatpush1.msra.mxu0 0.0
    %641 = vmatprep.subr.mxu0 0.0
    %642 = vmatpush1.msra.mxu0 0.0
    %643 = vmatprep.subr.mxu0 0.0
    %644 = vmatpush1.msra.mxu0 0.0
    %645 = vmatprep.subr.mxu0 0.0
    %646 = vmatpush1.msra.mxu0 0.0
    %647 = vmatprep.subr.mxu0 0.0
    %648 = vmatpush1.msra.mxu0 0.0
    %649 = vmatprep.subr.mxu0 0.0
    %650 = vmatpush1.msra.mxu0 0.0
    %651 = vmatprep.subr.mxu0 0.0
    %652 = vmatpush1.msra.mxu0 0.0
    %653 = vmatprep.subr.mxu0 0.0
    %654 = vmatpush1.msra.mxu0 0.0
    %655 = vmatprep.subr.mxu0 0.0
    %656 = vmatpush1.msra.mxu0 0.0
    %657 = vmatprep.subr.mxu0 0.0
    %658 = vmatpush1.msra.mxu0 0.0
    %659 = vmatprep.subr.mxu0 0.0
    %660 = vmatpush1.msra.mxu0 0.0
    %661 = vmatprep.subr.mxu0 0.0
    %662 = vmatpush1.msra.mxu0 0.0
    %663 = vmatprep.subr.mxu0 0.0
    %664 = vmatpush1.msra.mxu0 0.0
    %665 = vmatprep.subr.mxu0 0.0
    %666 = vmatpush1.msra.mxu0 0.0
    %667 = vmatprep.subr.mxu0 0.0
    %668 = vmatpush1.msra.mxu0 0.0
    %669 = vmatprep.subr.mxu0 0.0
    %670 = vmatpush1.msra.mxu0 0.0
    %671 = vmatprep.subr.mxu0 0.0
    %672 = vmatpush1.msra.mxu0 0.0
    %673 = vmatprep.subr.mxu0 0.0
    %674 = vmatpush1.msra.mxu0 0.0
    %675 = vmatprep.subr.mxu0 0.0
    %676 = vmatpush1.msra.mxu0 0.0
    %677 = vmatprep.subr.mxu0 0.0
    %678 = vmatpush1.msra.mxu0 0.0
    %679 = vmatprep.subr.mxu0 0.0
    %680 = vmatpush1.msra.mxu0 0.0
    %681 = vmatprep.subr.mxu0 0.0
    %682 = vmatpush1.msra.mxu0 0.0
    %683 = vmatprep.subr.mxu0 0.0
    %684 = vmatpush1.msra.mxu0 0.0
    %685 = vmatprep.subr.mxu0 0.0
    %686 = vmatpush1.msra.mxu0 0.0
    %687 = vmatprep.subr.mxu0 0.0
    %688 = vmatpush1.msra.mxu0 0.0
    %689 = vmatprep.subr.mxu0 0.0
    %690 = vmatpush1.msra.mxu0 0.0
    %691 = vmatprep.mubr.f32.mxu0 0.0
    %692 = vmatmul.mubr.f32.gmra.mrb[0].mxu0 %v262
    %v693 = vpop.f32.mrb[0].mxu0
    %v694 = vadd.f32 %v620, %v693
    %v695 = vpop.f32.mrb[0].mxu0
    %696 = vmatprep.mubr.f32.mxu0 0.0
    %697 = vmatmul.mubr.f32.gmra.mrb[0].mxu0 %v265
    %v698 = vpop.f32.mrb[0].mxu0
    %v699 = vadd.f32 %v622, %v698
    %v700 = vpop.f32.mrb[0].mxu0
    %701 = vdwg.mxu0
    %v702 = vlaneseq
    %v703 = vshrl.u32 %v702, 7
    %v704 = vsub.s32 2, %v703
    %v705 = vrot.slane %v169, %v704
    %v706 = vadd.f32 %v694, %v705
    %v707 = vadd.f32 %v699, %v705
    %vm708 = vcmp.gt.f32.partialorder %v706, 0.0
    %vm709 = vcmp.gt.f32.partialorder %v707, 0.0
    %v710 = vmul.f32 %v706, 0.01
    %v711 = vmul.f32 %v707, 0.01
    %v712 = vsel %vm708, %v706, %v710
    %v713 = vsel %vm709, %v707, %v711
    %vm714 = vcmp.gt.f32.partialorder %v158, 0.5
    %vm715 = vcmp.gt.f32.partialorder %v159, 0.5
    %v716 = vsel %vm714, 1, 0
    %v717 = vsel %vm715, 1, 0
    %718 = vset.pattern.permute.xlu0 0
    %719 = vperm.xlu0 %718, %v716
    %v720 = vpop.permute.xlu0 %719
    %721 = vset.pattern.permute.xlu0 0
    %722 = vperm.xlu0 %721, %v717
    %v723 = vpop.permute.xlu0 %722
    %vm724 = vcmp.eq.s32.totalorder %v720, 1
    %vm725 = vcmp.eq.s32.totalorder %v723, 1
    %v726 = vsel %vm724, %v712, -1e+30
    %v727 = vsel %vm725, %v713, -1e+30
    %vm728 = vcmask 261120
    %v729 = vsel %vm728, %v726, -inf
    %vm730 = vcmask 254976
    %v731 = vsel %vm730, %v727, -inf
    %v732 = vmax.f32 %v729, %v731
    %v733 = vrot.slane %v732, 4
    %v734 = vmax.f32 %v732, %v733
    %v735 = vrot.slane %v734, 2
    %v736 = vmax.f32 %v734, %v735
    %v737 = vrot.slane %v736, 1
    %v738 = vmax.f32 %v736, %v737
    %739 = vset.pattern.permute.xlu0 1
    %740 = vperm.xlu0 %739, %v716
    %v741 = vpop.permute.xlu0 %740
    %742 = vset.pattern.permute.xlu0 1
    %743 = vperm.xlu0 %742, %v717
    %v744 = vpop.permute.xlu0 %743
    %vm745 = vcmp.eq.s32.totalorder %v741, 1
    %vm746 = vcmp.eq.s32.totalorder %v744, 1
    %v747 = vsel %vm745, %v712, -1e+30
    %v748 = vsel %vm746, %v713, -1e+30
    %v749 = vsel %vm728, %v747, -inf
    %v750 = vsel %vm730, %v748, -inf
    %v751 = vmax.f32 %v749, %v750
    %v752 = vrot.slane %v751, 4
    %v753 = vmax.f32 %v751, %v752
    %v754 = vrot.slane %v753, 2
    %v755 = vmax.f32 %v753, %v754
    %v756 = vrot.slane %v755, 1
    %v757 = vmax.f32 %v755, %v756
    %vm758 = vcmask 1040384
    %v759 = vsel %vm758, %v738, %v757
    %v760 = vlaneseq
    %v761 = vshrl.u32 %v760, 7
    %v762 = vsub.s32 3, %v761
    %v763 = vrot.slane %v169, %v762
    %v765 = vsel %vm728, %v759, 0
    %767 = vmatprep.subr.mxu0 0.0
    %768 = vmatpush1.msra.mxu0 %v165
    %769 = vmatprep.subr.mxu0 0.0
    %770 = vmatpush1.msra.mxu0 %v166
    %771 = vmatprep.subr.mxu0 0.0
    %772 = vmatpush1.msra.mxu0 %v167
    %773 = vmatprep.subr.mxu0 0.0
    %774 = vmatpush1.msra.mxu0 %v168
    %775 = vmatprep.subr.mxu0 0.0
    %776 = vmatpush1.msra.mxu0 0.0
    %777 = vmatprep.subr.mxu0 0.0
    %778 = vmatpush1.msra.mxu0 0.0
    %779 = vmatprep.subr.mxu0 0.0
    %780 = vmatpush1.msra.mxu0 0.0
    %781 = vmatprep.subr.mxu0 0.0
    %782 = vmatpush1.msra.mxu0 0.0
    %783 = vmatprep.subr.mxu0 0.0
    %784 = vmatpush1.msra.mxu0 0.0
    %785 = vmatprep.subr.mxu0 0.0
    %786 = vmatpush1.msra.mxu0 0.0
    %787 = vmatprep.subr.mxu0 0.0
    %788 = vmatpush1.msra.mxu0 0.0
    %789 = vmatprep.subr.mxu0 0.0
    %790 = vmatpush1.msra.mxu0 0.0
    %791 = vmatprep.subr.mxu0 0.0
    %792 = vmatpush1.msra.mxu0 0.0
    %793 = vmatprep.subr.mxu0 0.0
    %794 = vmatpush1.msra.mxu0 0.0
    %795 = vmatprep.subr.mxu0 0.0
    %796 = vmatpush1.msra.mxu0 0.0
    %797 = vmatprep.subr.mxu0 0.0
    %798 = vmatpush1.msra.mxu0 0.0
    %799 = vmatprep.subr.mxu0 0.0
    %800 = vmatpush1.msra.mxu0 0.0
    %801 = vmatprep.subr.mxu0 0.0
    %802 = vmatpush1.msra.mxu0 0.0
    %803 = vmatprep.subr.mxu0 0.0
    %804 = vmatpush1.msra.mxu0 0.0
    %805 = vmatprep.subr.mxu0 0.0
    %806 = vmatpush1.msra.mxu0 0.0
    %807 = vmatprep.subr.mxu0 0.0
    %808 = vmatpush1.msra.mxu0 0.0
    %809 = vmatprep.subr.mxu0 0.0
    %810 = vmatpush1.msra.mxu0 0.0
    %811 = vmatprep.subr.mxu0 0.0
    %812 = vmatpush1.msra.mxu0 0.0
    %813 = vmatprep.subr.mxu0 0.0
    %814 = vmatpush1.msra.mxu0 0.0
    %815 = vmatprep.subr.mxu0 0.0
    %816 = vmatpush1.msra.mxu0 0.0
    %817 = vmatprep.subr.mxu0 0.0
    %818 = vmatpush1.msra.mxu0 0.0
    %819 = vmatprep.subr.mxu0 0.0
    %820 = vmatpush1.msra.mxu0 0.0
    %821 = vmatprep.subr.mxu0 0.0
    %822 = vmatpush1.msra.mxu0 0.0
    %823 = vmatprep.subr.mxu0 0.0
    %824 = vmatpush1.msra.mxu0 0.0
    %825 = vmatprep.subr.mxu0 0.0
    %826 = vmatpush1.msra.mxu0 0.0
    %827 = vmatprep.subr.mxu0 0.0
    %828 = vmatpush1.msra.mxu0 0.0
    %829 = vmatprep.subr.mxu0 0.0
    %830 = vmatpush1.msra.mxu0 0.0
    %831 = vmatprep.mubr.f32.mxu0 0.0
    %832 = vmatmul.mubr.f32.gmra.mrb[0].mxu0 %v765
    %v833 = vpop.f32.mrb[0].mxu0
    %v834 = vadd.f32 %v763, %v833
    %v835 = vpop.f32.mrb[0].mxu0
    %836 = vdwg.mxu0
    %vm837 = vcmp.gt.f32.partialorder %v834, 0.0
    %v838 = vmul.f32 %v834, 0.01
    %v839 = vsel %vm837, %v834, %v838
    %v840 = vld [vmem:[%s5] sm:$0xff]
    %v841 = vld [vmem:[%s5 + $0x8] sm:$0xff]
    %v842 = vld [vmem:[%s5 + $0x10] sm:$0x3f]
    %v843 = vld [vmem:[%s6] sm:$0xff]
    %v844 = vld [vmem:[%s6 + $0x8] sm:$0xff]
    %v845 = vld [vmem:[%s6 + $0x10] sm:$0x3f]
    %v846 = vld [vmem:[%s8] sm:$0xff]
    %v847 = vld [vmem:[%s8 + $0x8] sm:$0xff]
    %v848 = vld [vmem:[%s8 + $0x10] sm:$0xff]
    %v849 = vld [vmem:[%s8 + $0x18] sm:$0xff]
    %v850 = vld [vmem:[%s8 + $0x20] sm:$0xff]
    %v851 = vld [vmem:[%s8 + $0x28] sm:$0xff]
    %v852 = vld [vmem:[%s8 + $0x30] sm:$0xff]
    %v853 = vld [vmem:[%s8 + $0x38] sm:$0xff]
    %v854 = vld [vmem:[%s8 + $0x40] sm:$0xff]
    %v855 = vld [vmem:[%s8 + $0x48] sm:$0xff]
    %v856 = vld [vmem:[%s8 + $0x50] sm:$0xff]
    %v857 = vld [vmem:[%s8 + $0x58] sm:$0xff]
    %v858 = vld [vmem:[%s8 + $0x60] sm:$0xff]
    %v859 = vld [vmem:[%s8 + $0x68] sm:$0xff]
    %v860 = vld [vmem:[%s8 + $0x70] sm:$0xff]
    %v861 = vld [vmem:[%s8 + $0x78] sm:$0xff]
    %v862 = vld [vmem:[%s8 + $0x80] sm:$0xff]
    %v863 = vld [vmem:[%s8 + $0x88] sm:$0xff]
    %v864 = vld [vmem:[%s8 + $0x90] sm:$0xff]
    %v865 = vld [vmem:[%s8 + $0x98] sm:$0xff]
    %v866 = vld [vmem:[%s8 + $0xa0] sm:$0xff]
    %v867 = vld [vmem:[%s8 + $0xa8] sm:$0xff]
    %v868 = vld [vmem:[%s8 + $0xb0] sm:$0xff]
    %v869 = vld [vmem:[%s8 + $0xb8] sm:$0xf]
    %870 = vmatprep.subr.mxu0 0.0
    %871 = vmatpush1.msra.mxu0 %v846
    %872 = vmatprep.subr.mxu0 0.0
    %873 = vmatpush1.msra.mxu0 %v847
    %874 = vmatprep.subr.mxu0 0.0
    %875 = vmatpush1.msra.mxu0 %v848
    %876 = vmatprep.subr.mxu0 0.0
    %877 = vmatpush1.msra.mxu0 %v849
    %878 = vmatprep.subr.mxu0 0.0
    %879 = vmatpush1.msra.mxu0 %v850
    %880 = vmatprep.subr.mxu0 0.0
    %881 = vmatpush1.msra.mxu0 %v851
    %882 = vmatprep.subr.mxu0 0.0
    %883 = vmatpush1.msra.mxu0 %v852
    %884 = vmatprep.subr.mxu0 0.0
    %885 = vmatpush1.msra.mxu0 %v853
    %886 = vmatprep.subr.mxu0 0.0
    %887 = vmatpush1.msra.mxu0 %v854
    %888 = vmatprep.subr.mxu0 0.0
    %889 = vmatpush1.msra.mxu0 %v855
    %890 = vmatprep.subr.mxu0 0.0
    %891 = vmatpush1.msra.mxu0 %v856
    %892 = vmatprep.subr.mxu0 0.0
    %893 = vmatpush1.msra.mxu0 %v857
    %894 = vmatprep.subr.mxu0 0.0
    %895 = vmatpush1.msra.mxu0 %v858
    %896 = vmatprep.subr.mxu0 0.0
    %897 = vmatpush1.msra.mxu0 %v859
    %898 = vmatprep.subr.mxu0 0.0
    %899 = vmatpush1.msra.mxu0 %v860
    %900 = vmatprep.subr.mxu0 0.0
    %901 = vmatpush1.msra.mxu0 %v861
    %902 = vmatprep.subr.mxu0 0.0
    %903 = vmatpush1.msra.mxu0 0.0
    %904 = vmatprep.subr.mxu0 0.0
    %905 = vmatpush1.msra.mxu0 0.0
    %906 = vmatprep.subr.mxu0 0.0
    %907 = vmatpush1.msra.mxu0 0.0
    %908 = vmatprep.subr.mxu0 0.0
    %909 = vmatpush1.msra.mxu0 0.0
    %910 = vmatprep.subr.mxu0 0.0
    %911 = vmatpush1.msra.mxu0 0.0
    %912 = vmatprep.subr.mxu0 0.0
    %913 = vmatpush1.msra.mxu0 0.0
    %914 = vmatprep.subr.mxu0 0.0
    %915 = vmatpush1.msra.mxu0 0.0
    %916 = vmatprep.subr.mxu0 0.0
    %917 = vmatpush1.msra.mxu0 0.0
    %918 = vmatprep.subr.mxu0 0.0
    %919 = vmatpush1.msra.mxu0 0.0
    %920 = vmatprep.subr.mxu0 0.0
    %921 = vmatpush1.msra.mxu0 0.0
    %922 = vmatprep.subr.mxu0 0.0
    %923 = vmatpush1.msra.mxu0 0.0
    %924 = vmatprep.subr.mxu0 0.0
    %925 = vmatpush1.msra.mxu0 0.0
    %926 = vmatprep.subr.mxu0 0.0
    %927 = vmatpush1.msra.mxu0 0.0
    %928 = vmatprep.subr.mxu0 0.0
    %929 = vmatpush1.msra.mxu0 0.0
    %930 = vmatprep.subr.mxu0 0.0
    %931 = vmatpush1.msra.mxu0 0.0
    %932 = vmatprep.subr.mxu0 0.0
    %933 = vmatpush1.msra.mxu0 0.0
    %934 = vmatprep.mubr.f32.mxu0 0.0
    %935 = vmatmul.mubr.f32.gmra.mrb[0].mxu0 %v141
    %v936 = vpop.f32.mrb[0].mxu0
    %v937 = vadd.f32 0.0, %v936
    %v938 = vpop.f32.mrb[0].mxu0
    %939 = vmatprep.mubr.f32.mxu0 0.0
    %940 = vmatmul.mubr.f32.gmra.mrb[0].mxu0 %v146
    %v941 = vpop.f32.mrb[0].mxu0
    %v942 = vadd.f32 0.0, %v941
    %v943 = vpop.f32.mrb[0].mxu0
    %944 = vmatprep.mubr.f32.mxu0 0.0
    %945 = vmatmul.mubr.f32.gmra.mrb[0].mxu0 %v151
    %v946 = vpop.f32.mrb[0].mxu0
    %v947 = vadd.f32 0.0, %v946
    %v948 = vpop.f32.mrb[0].mxu0
    %949 = vdwg.mxu0
    %953 = vrot.lane.b32.xlu0 %v937, 120
    %v954 = vpop.permute.xlu0 %953
    %955 = vrot.lane.b32.xlu0 %v942, 120
    %v956 = vpop.permute.xlu0 %955
    %957 = vrot.lane.b32.xlu0 %v947, 120
    %v958 = vpop.permute.xlu0 %957
    %vm962 = vcmask 179200
    %v964 = vsel %vm962, %v840, 0
    %v967 = vsel %vm962, %v841, 0
    %v970 = vsel %vm962, %v842, 0
    %vm972 = vcmask 1045504
    %v973 = vsel %vm972, %v947, 0
    %975 = vmatprep.subr.mxu0 0.0
    %976 = vmatpush1.msra.mxu0 %v937
    %977 = vmatprep.subr.mxu0 0.0
    %978 = vmatpush1.msra.mxu0 %v942
    %979 = vmatprep.subr.mxu0 0.0
    %980 = vmatpush1.msra.mxu0 %v973
    %981 = vmatprep.subr.mxu0 0.0
    %982 = vmatpush1.msra.mxu0 0.0
    %983 = vmatprep.subr.mxu0 0.0
    %984 = vmatpush1.msra.mxu0 0.0
    %985 = vmatprep.subr.mxu0 0.0
    %986 = vmatpush1.msra.mxu0 0.0
    %987 = vmatprep.subr.mxu0 0.0
    %988 = vmatpush1.msra.mxu0 0.0
    %989 = vmatprep.subr.mxu0 0.0
    %990 = vmatpush1.msra.mxu0 0.0
    %991 = vmatprep.subr.mxu0 0.0
    %992 = vmatpush1.msra.mxu0 0.0
    %993 = vmatprep.subr.mxu0 0.0
    %994 = vmatpush1.msra.mxu0 0.0
    %995 = vmatprep.subr.mxu0 0.0
    %996 = vmatpush1.msra.mxu0 0.0
    %997 = vmatprep.subr.mxu0 0.0
    %998 = vmatpush1.msra.mxu0 0.0
    %999 = vmatprep.subr.mxu0 0.0
    %1000 = vmatpush1.msra.mxu0 0.0
    %1001 = vmatprep.subr.mxu0 0.0
    %1002 = vmatpush1.msra.mxu0 0.0
    %1003 = vmatprep.subr.mxu0 0.0
    %1004 = vmatpush1.msra.mxu0 0.0
    %1005 = vmatprep.subr.mxu0 0.0
    %1006 = vmatpush1.msra.mxu0 0.0
    %1007 = vmatprep.subr.mxu0 0.0
    %1008 = vmatpush1.msra.mxu0 0.0
    %1009 = vmatprep.subr.mxu0 0.0
    %1010 = vmatpush1.msra.mxu0 0.0
    %1011 = vmatprep.subr.mxu0 0.0
    %1012 = vmatpush1.msra.mxu0 0.0
    %1013 = vmatprep.subr.mxu0 0.0
    %1014 = vmatpush1.msra.mxu0 0.0
    %1015 = vmatprep.subr.mxu0 0.0
    %1016 = vmatpush1.msra.mxu0 0.0
    %1017 = vmatprep.subr.mxu0 0.0
    %1018 = vmatpush1.msra.mxu0 0.0
    %1019 = vmatprep.subr.mxu0 0.0
    %1020 = vmatpush1.msra.mxu0 0.0
    %1021 = vmatprep.subr.mxu0 0.0
    %1022 = vmatpush1.msra.mxu0 0.0
    %1023 = vmatprep.subr.mxu0 0.0
    %1024 = vmatpush1.msra.mxu0 0.0
    %1025 = vmatprep.subr.mxu0 0.0
    %1026 = vmatpush1.msra.mxu0 0.0
    %1027 = vmatprep.subr.mxu0 0.0
    %1028 = vmatpush1.msra.mxu0 0.0
    %1029 = vmatprep.subr.mxu0 0.0
    %1030 = vmatpush1.msra.mxu0 0.0
    %1031 = vmatprep.subr.mxu0 0.0
    %1032 = vmatpush1.msra.mxu0 0.0
    %1033 = vmatprep.subr.mxu0 0.0
    %1034 = vmatpush1.msra.mxu0 0.0
    %1035 = vmatprep.subr.mxu0 0.0
    %1036 = vmatpush1.msra.mxu0 0.0
    %1037 = vmatprep.subr.mxu0 0.0
    %1038 = vmatpush1.msra.mxu0 0.0
    %1039 = vmatprep.mubr.f32.mxu0 0.0
    %1040 = vmatmul.mubr.f32.gmra.mrb[0].mxu0 %v964
    %v1041 = vpop.f32.mrb[0].mxu0
    %v1042 = vadd.f32 %v954, %v1041
    %v1043 = vpop.f32.mrb[0].mxu0
    %1044 = vmatprep.mubr.f32.mxu0 0.0
    %1045 = vmatmul.mubr.f32.gmra.mrb[0].mxu0 %v967
    %v1046 = vpop.f32.mrb[0].mxu0
    %v1047 = vadd.f32 %v956, %v1046
    %v1048 = vpop.f32.mrb[0].mxu0
    %1049 = vmatprep.mubr.f32.mxu0 0.0
    %1050 = vmatmul.mubr.f32.gmra.mrb[0].mxu0 %v970
    %v1051 = vpop.f32.mrb[0].mxu0
    %v1052 = vadd.f32 %v958, %v1051
    %v1053 = vpop.f32.mrb[0].mxu0
    %1054 = vdwg.mxu0
    %v1055 = vlaneseq
    %v1056 = vshrl.u32 %v1055, 7
    %v1057 = vsub.s32 0, %v1056
    %v1058 = vrot.slane %v869, %v1057
    %v1059 = vadd.f32 %v1042, %v1058
    %v1060 = vadd.f32 %v1047, %v1058
    %v1061 = vadd.f32 %v1052, %v1058
    %vm1062 = vcmp.gt.f32.partialorder %v1059, 0.0
    %vm1063 = vcmp.gt.f32.partialorder %v1060, 0.0
    %vm1064 = vcmp.gt.f32.partialorder %v1061, 0.0
    %v1065 = vmul.f32 %v1059, 0.01
    %v1066 = vmul.f32 %v1060, 0.01
    %v1067 = vmul.f32 %v1061, 0.01
    %v1068 = vsel %vm1062, %v1059, %v1065
    %v1069 = vsel %vm1063, %v1060, %v1066
    %v1070 = vsel %vm1064, %v1061, %v1067
    %v1072 = vsel %vm357, %v1068, 0
    %v1075 = vsel %vm357, %v1069, 0
    %v1078 = vsel %vm357, %v1070, 0
    %1080 = vmatprep.subr.mxu0 0.0
    %1081 = vmatpush1.msra.mxu0 %v862
    %1082 = vmatprep.subr.mxu0 0.0
    %1083 = vmatpush1.msra.mxu0 0.0
    %1084 = vmatprep.subr.mxu0 0.0
    %1085 = vmatpush1.msra.mxu0 0.0
    %1086 = vmatprep.subr.mxu0 0.0
    %1087 = vmatpush1.msra.mxu0 0.0
    %1088 = vmatprep.subr.mxu0 0.0
    %1089 = vmatpush1.msra.mxu0 0.0
    %1090 = vmatprep.subr.mxu0 0.0
    %1091 = vmatpush1.msra.mxu0 0.0
    %1092 = vmatprep.subr.mxu0 0.0
    %1093 = vmatpush1.msra.mxu0 0.0
    %1094 = vmatprep.subr.mxu0 0.0
    %1095 = vmatpush1.msra.mxu0 0.0
    %1096 = vmatprep.subr.mxu0 0.0
    %1097 = vmatpush1.msra.mxu0 0.0
    %1098 = vmatprep.subr.mxu0 0.0
    %1099 = vmatpush1.msra.mxu0 0.0
    %1100 = vmatprep.subr.mxu0 0.0
    %1101 = vmatpush1.msra.mxu0 0.0
    %1102 = vmatprep.subr.mxu0 0.0
    %1103 = vmatpush1.msra.mxu0 0.0
    %1104 = vmatprep.subr.mxu0 0.0
    %1105 = vmatpush1.msra.mxu0 0.0
    %1106 = vmatprep.subr.mxu0 0.0
    %1107 = vmatpush1.msra.mxu0 0.0
    %1108 = vmatprep.subr.mxu0 0.0
    %1109 = vmatpush1.msra.mxu0 0.0
    %1110 = vmatprep.subr.mxu0 0.0
    %1111 = vmatpush1.msra.mxu0 0.0
    %1112 = vmatprep.subr.mxu0 0.0
    %1113 = vmatpush1.msra.mxu0 0.0
    %1114 = vmatprep.subr.mxu0 0.0
    %1115 = vmatpush1.msra.mxu0 0.0
    %1116 = vmatprep.subr.mxu0 0.0
    %1117 = vmatpush1.msra.mxu0 0.0
    %1118 = vmatprep.subr.mxu0 0.0
    %1119 = vmatpush1.msra.mxu0 0.0
    %1120 = vmatprep.subr.mxu0 0.0
    %1121 = vmatpush1.msra.mxu0 0.0
    %1122 = vmatprep.subr.mxu0 0.0
    %1123 = vmatpush1.msra.mxu0 0.0
    %1124 = vmatprep.subr.mxu0 0.0
    %1125 = vmatpush1.msra.mxu0 0.0
    %1126 = vmatprep.subr.mxu0 0.0
    %1127 = vmatpush1.msra.mxu0 0.0
    %1128 = vmatprep.subr.mxu0 0.0
    %1129 = vmatpush1.msra.mxu0 0.0
    %1130 = vmatprep.subr.mxu0 0.0
    %1131 = vmatpush1.msra.mxu0 0.0
    %1132 = vmatprep.subr.mxu0 0.0
    %1133 = vmatpush1.msra.mxu0 0.0
    %1134 = vmatprep.subr.mxu0 0.0
    %1135 = vmatpush1.msra.mxu0 0.0
    %1136 = vmatprep.subr.mxu0 0.0
    %1137 = vmatpush1.msra.mxu0 0.0
    %1138 = vmatprep.subr.mxu0 0.0
    %1139 = vmatpush1.msra.mxu0 0.0
    %1140 = vmatprep.subr.mxu0 0.0
    %1141 = vmatpush1.msra.mxu0 0.0
    %1142 = vmatprep.subr.mxu0 0.0
    %1143 = vmatpush1.msra.mxu0 0.0
    %1144 = vmatprep.mubr.f32.mxu0 0.0
    %1145 = vmatmul.mubr.f32.gmra.mrb[0].mxu0 %v1072
    %v1146 = vpop.f32.mrb[0].mxu0
    %v1147 = vadd.f32 0.0, %v1146
    %v1148 = vpop.f32.mrb[0].mxu0
    %1149 = vmatprep.mubr.f32.mxu0 0.0
    %1150 = vmatmul.mubr.f32.gmra.mrb[0].mxu0 %v1075
    %v1151 = vpop.f32.mrb[0].mxu0
    %v1152 = vadd.f32 0.0, %v1151
    %v1153 = vpop.f32.mrb[0].mxu0
    %1154 = vmatprep.mubr.f32.mxu0 0.0
    %1155 = vmatmul.mubr.f32.gmra.mrb[0].mxu0 %v1078
    %v1156 = vpop.f32.mrb[0].mxu0
    %v1157 = vadd.f32 0.0, %v1156
    %v1158 = vpop.f32.mrb[0].mxu0
    %1159 = vdwg.mxu0
    %1163 = vrot.lane.b32.xlu0 %v1147, 112
    %v1164 = vpop.permute.xlu0 %1163
    %1165 = vrot.lane.b32.xlu0 %v1152, 112
    %v1166 = vpop.permute.xlu0 %1165
    %1167 = vrot.lane.b32.xlu0 %v1157, 112
    %v1168 = vpop.permute.xlu0 %1167
    %v1172 = vsel %vm972, %v1157, 0
    %1174 = vmatprep.subr.mxu0 0.0
    %1175 = vmatpush1.msra.mxu0 %v1147
    %1176 = vmatprep.subr.mxu0 0.0
    %1177 = vmatpush1.msra.mxu0 %v1152
    %1178 = vmatprep.subr.mxu0 0.0
    %1179 = vmatpush1.msra.mxu0 %v1172
    %1180 = vmatprep.subr.mxu0 0.0
    %1181 = vmatpush1.msra.mxu0 0.0
    %1182 = vmatprep.subr.mxu0 0.0
    %1183 = vmatpush1.msra.mxu0 0.0
    %1184 = vmatprep.subr.mxu0 0.0
    %1185 = vmatpush1.msra.mxu0 0.0
    %1186 = vmatprep.subr.mxu0 0.0
    %1187 = vmatpush1.msra.mxu0 0.0
    %1188 = vmatprep.subr.mxu0 0.0
    %1189 = vmatpush1.msra.mxu0 0.0
    %1190 = vmatprep.subr.mxu0 0.0
    %1191 = vmatpush1.msra.mxu0 0.0
    %1192 = vmatprep.subr.mxu0 0.0
    %1193 = vmatpush1.msra.mxu0 0.0
    %1194 = vmatprep.subr.mxu0 0.0
    %1195 = vmatpush1.msra.mxu0 0.0
    %1196 = vmatprep.subr.mxu0 0.0
    %1197 = vmatpush1.msra.mxu0 0.0
    %1198 = vmatprep.subr.mxu0 0.0
    %1199 = vmatpush1.msra.mxu0 0.0
    %1200 = vmatprep.subr.mxu0 0.0
    %1201 = vmatpush1.msra.mxu0 0.0
    %1202 = vmatprep.subr.mxu0 0.0
    %1203 = vmatpush1.msra.mxu0 0.0
    %1204 = vmatprep.subr.mxu0 0.0
    %1205 = vmatpush1.msra.mxu0 0.0
    %1206 = vmatprep.subr.mxu0 0.0
    %1207 = vmatpush1.msra.mxu0 0.0
    %1208 = vmatprep.subr.mxu0 0.0
    %1209 = vmatpush1.msra.mxu0 0.0
    %1210 = vmatprep.subr.mxu0 0.0
    %1211 = vmatpush1.msra.mxu0 0.0
    %1212 = vmatprep.subr.mxu0 0.0
    %1213 = vmatpush1.msra.mxu0 0.0
    %1214 = vmatprep.subr.mxu0 0.0
    %1215 = vmatpush1.msra.mxu0 0.0
    %1216 = vmatprep.subr.mxu0 0.0
    %1217 = vmatpush1.msra.mxu0 0.0
    %1218 = vmatprep.subr.mxu0 0.0
    %1219 = vmatpush1.msra.mxu0 0.0
    %1220 = vmatprep.subr.mxu0 0.0
    %1221 = vmatpush1.msra.mxu0 0.0
    %1222 = vmatprep.subr.mxu0 0.0
    %1223 = vmatpush1.msra.mxu0 0.0
    %1224 = vmatprep.subr.mxu0 0.0
    %1225 = vmatpush1.msra.mxu0 0.0
    %1226 = vmatprep.subr.mxu0 0.0
    %1227 = vmatpush1.msra.mxu0 0.0
    %1228 = vmatprep.subr.mxu0 0.0
    %1229 = vmatpush1.msra.mxu0 0.0
    %1230 = vmatprep.subr.mxu0 0.0
    %1231 = vmatpush1.msra.mxu0 0.0
    %1232 = vmatprep.subr.mxu0 0.0
    %1233 = vmatpush1.msra.mxu0 0.0
    %1234 = vmatprep.subr.mxu0 0.0
    %1235 = vmatpush1.msra.mxu0 0.0
    %1236 = vmatprep.subr.mxu0 0.0
    %1237 = vmatpush1.msra.mxu0 0.0
    %1238 = vmatprep.mubr.f32.mxu0 0.0
    %1239 = vmatmul.mubr.f32.gmra.mrb[0].mxu0 %v964
    %v1240 = vpop.f32.mrb[0].mxu0
    %v1241 = vadd.f32 %v1164, %v1240
    %v1242 = vpop.f32.mrb[0].mxu0
    %1243 = vmatprep.mubr.f32.mxu0 0.0
    %1244 = vmatmul.mubr.f32.gmra.mrb[0].mxu0 %v967
    %v1245 = vpop.f32.mrb[0].mxu0
    %v1246 = vadd.f32 %v1166, %v1245
    %v1247 = vpop.f32.mrb[0].mxu0
    %1248 = vmatprep.mubr.f32.mxu0 0.0
    %1249 = vmatmul.mubr.f32.gmra.mrb[0].mxu0 %v970
    %v1250 = vpop.f32.mrb[0].mxu0
    %v1251 = vadd.f32 %v1168, %v1250
    %v1252 = vpop.f32.mrb[0].mxu0
    %1253 = vdwg.mxu0
    %v1254 = vlaneseq
    %v1255 = vshrl.u32 %v1254, 7
    %v1256 = vsub.s32 1, %v1255
    %v1257 = vrot.slane %v869, %v1256
    %v1258 = vadd.f32 %v1241, %v1257
    %v1259 = vadd.f32 %v1246, %v1257
    %v1260 = vadd.f32 %v1251, %v1257
    %vm1261 = vcmp.gt.f32.partialorder %v1258, 0.0
    %vm1262 = vcmp.gt.f32.partialorder %v1259, 0.0
    %vm1263 = vcmp.gt.f32.partialorder %v1260, 0.0
    %v1264 = vmul.f32 %v1258, 0.01
    %v1265 = vmul.f32 %v1259, 0.01
    %v1266 = vmul.f32 %v1260, 0.01
    %v1267 = vsel %vm1261, %v1258, %v1264
    %v1268 = vsel %vm1262, %v1259, %v1265
    %v1269 = vsel %vm1263, %v1260, %v1266
    %v1271 = vsel %vm170, %v1267, 0
    %v1274 = vsel %vm170, %v1268, 0
    %v1277 = vsel %vm170, %v1269, 0
    %1279 = vmatprep.subr.mxu0 0.0
    %1280 = vmatpush1.msra.mxu0 %v863
    %1281 = vmatprep.subr.mxu0 0.0
    %1282 = vmatpush1.msra.mxu0 %v864
    %1283 = vmatprep.subr.mxu0 0.0
    %1284 = vmatpush1.msra.mxu0 0.0
    %1285 = vmatprep.subr.mxu0 0.0
    %1286 = vmatpush1.msra.mxu0 0.0
    %1287 = vmatprep.subr.mxu0 0.0
    %1288 = vmatpush1.msra.mxu0 0.0
    %1289 = vmatprep.subr.mxu0 0.0
    %1290 = vmatpush1.msra.mxu0 0.0
    %1291 = vmatprep.subr.mxu0 0.0
    %1292 = vmatpush1.msra.mxu0 0.0
    %1293 = vmatprep.subr.mxu0 0.0
    %1294 = vmatpush1.msra.mxu0 0.0
    %1295 = vmatprep.subr.mxu0 0.0
    %1296 = vmatpush1.msra.mxu0 0.0
    %1297 = vmatprep.subr.mxu0 0.0
    %1298 = vmatpush1.msra.mxu0 0.0
    %1299 = vmatprep.subr.mxu0 0.0
    %1300 = vmatpush1.msra.mxu0 0.0
    %1301 = vmatprep.subr.mxu0 0.0
    %1302 = vmatpush1.msra.mxu0 0.0
    %1303 = vmatprep.subr.mxu0 0.0
    %1304 = vmatpush1.msra.mxu0 0.0
    %1305 = vmatprep.subr.mxu0 0.0
    %1306 = vmatpush1.msra.mxu0 0.0
    %1307 = vmatprep.subr.mxu0 0.0
    %1308 = vmatpush1.msra.mxu0 0.0
    %1309 = vmatprep.subr.mxu0 0.0
    %1310 = vmatpush1.msra.mxu0 0.0
    %1311 = vmatprep.subr.mxu0 0.0
    %1312 = vmatpush1.msra.mxu0 0.0
    %1313 = vmatprep.subr.mxu0 0.0
    %1314 = vmatpush1.msra.mxu0 0.0
    %1315 = vmatprep.subr.mxu0 0.0
    %1316 = vmatpush1.msra.mxu0 0.0
    %1317 = vmatprep.subr.mxu0 0.0
    %1318 = vmatpush1.msra.mxu0 0.0
    %1319 = vmatprep.subr.mxu0 0.0
    %1320 = vmatpush1.msra.mxu0 0.0
    %1321 = vmatprep.subr.mxu0 0.0
    %1322 = vmatpush1.msra.mxu0 0.0
    %1323 = vmatprep.subr.mxu0 0.0
    %1324 = vmatpush1.msra.mxu0 0.0
    %1325 = vmatprep.subr.mxu0 0.0
    %1326 = vmatpush1.msra.mxu0 0.0
    %1327 = vmatprep.subr.mxu0 0.0
    %1328 = vmatpush1.msra.mxu0 0.0
    %1329 = vmatprep.subr.mxu0 0.0
    %1330 = vmatpush1.msra.mxu0 0.0
    %1331 = vmatprep.subr.mxu0 0.0
    %1332 = vmatpush1.msra.mxu0 0.0
    %1333 = vmatprep.subr.mxu0 0.0
    %1334 = vmatpush1.msra.mxu0 0.0
    %1335 = vmatprep.subr.mxu0 0.0
    %1336 = vmatpush1.msra.mxu0 0.0
    %1337 = vmatprep.subr.mxu0 0.0
    %1338 = vmatpush1.msra.mxu0 0.0
    %1339 = vmatprep.subr.mxu0 0.0
    %1340 = vmatpush1.msra.mxu0 0.0
    %1341 = vmatprep.subr.mxu0 0.0
    %1342 = vmatpush1.msra.mxu0 0.0
    %1343 = vmatprep.mubr.f32.mxu0 0.0
    %1344 = vmatmul.mubr.f32.gmra.mrb[0].mxu0 %v1271
    %v1345 = vpop.f32.mrb[0].mxu0
    %v1346 = vadd.f32 0.0, %v1345
    %v1347 = vpop.f32.mrb[0].mxu0
    %1348 = vmatprep.mubr.f32.mxu0 0.0
    %1349 = vmatmul.mubr.f32.gmra.mrb[0].mxu0 %v1274
    %v1350 = vpop.f32.mrb[0].mxu0
    %v1351 = vadd.f32 0.0, %v1350
    %v1352 = vpop.f32.mrb[0].mxu0
    %1353 = vmatprep.mubr.f32.mxu0 0.0
    %1354 = vmatmul.mubr.f32.gmra.mrb[0].mxu0 %v1277
    %v1355 = vpop.f32.mrb[0].mxu0
    %v1356 = vadd.f32 0.0, %v1355
    %v1357 = vpop.f32.mrb[0].mxu0
    %1358 = vdwg.mxu0
    %1362 = vrot.lane.b32.xlu0 %v1346, 96
    %v1363 = vpop.permute.xlu0 %1362
    %1364 = vrot.lane.b32.xlu0 %v1351, 96
    %v1365 = vpop.permute.xlu0 %1364
    %1366 = vrot.lane.b32.xlu0 %v1356, 96
    %v1367 = vpop.permute.xlu0 %1366
    %v1371 = vsel %vm972, %v1356, 0
    %1373 = vmatprep.subr.mxu0 0.0
    %1374 = vmatpush1.msra.mxu0 %v1346
    %1375 = vmatprep.subr.mxu0 0.0
    %1376 = vmatpush1.msra.mxu0 %v1351
    %1377 = vmatprep.subr.mxu0 0.0
    %1378 = vmatpush1.msra.mxu0 %v1371
    %1379 = vmatprep.subr.mxu0 0.0
    %1380 = vmatpush1.msra.mxu0 0.0
    %1381 = vmatprep.subr.mxu0 0.0
    %1382 = vmatpush1.msra.mxu0 0.0
    %1383 = vmatprep.subr.mxu0 0.0
    %1384 = vmatpush1.msra.mxu0 0.0
    %1385 = vmatprep.subr.mxu0 0.0
    %1386 = vmatpush1.msra.mxu0 0.0
    %1387 = vmatprep.subr.mxu0 0.0
    %1388 = vmatpush1.msra.mxu0 0.0
    %1389 = vmatprep.subr.mxu0 0.0
    %1390 = vmatpush1.msra.mxu0 0.0
    %1391 = vmatprep.subr.mxu0 0.0
    %1392 = vmatpush1.msra.mxu0 0.0
    %1393 = vmatprep.subr.mxu0 0.0
    %1394 = vmatpush1.msra.mxu0 0.0
    %1395 = vmatprep.subr.mxu0 0.0
    %1396 = vmatpush1.msra.mxu0 0.0
    %1397 = vmatprep.subr.mxu0 0.0
    %1398 = vmatpush1.msra.mxu0 0.0
    %1399 = vmatprep.subr.mxu0 0.0
    %1400 = vmatpush1.msra.mxu0 0.0
    %1401 = vmatprep.subr.mxu0 0.0
    %1402 = vmatpush1.msra.mxu0 0.0
    %1403 = vmatprep.subr.mxu0 0.0
    %1404 = vmatpush1.msra.mxu0 0.0
    %1405 = vmatprep.subr.mxu0 0.0
    %1406 = vmatpush1.msra.mxu0 0.0
    %1407 = vmatprep.subr.mxu0 0.0
    %1408 = vmatpush1.msra.mxu0 0.0
    %1409 = vmatprep.subr.mxu0 0.0
    %1410 = vmatpush1.msra.mxu0 0.0
    %1411 = vmatprep.subr.mxu0 0.0
    %1412 = vmatpush1.msra.mxu0 0.0
    %1413 = vmatprep.subr.mxu0 0.0
    %1414 = vmatpush1.msra.mxu0 0.0
    %1415 = vmatprep.subr.mxu0 0.0
    %1416 = vmatpush1.msra.mxu0 0.0
    %1417 = vmatprep.subr.mxu0 0.0
    %1418 = vmatpush1.msra.mxu0 0.0
    %1419 = vmatprep.subr.mxu0 0.0
    %1420 = vmatpush1.msra.mxu0 0.0
    %1421 = vmatprep.subr.mxu0 0.0
    %1422 = vmatpush1.msra.mxu0 0.0
    %1423 = vmatprep.subr.mxu0 0.0
    %1424 = vmatpush1.msra.mxu0 0.0
    %1425 = vmatprep.subr.mxu0 0.0
    %1426 = vmatpush1.msra.mxu0 0.0
    %1427 = vmatprep.subr.mxu0 0.0
    %1428 = vmatpush1.msra.mxu0 0.0
    %1429 = vmatprep.subr.mxu0 0.0
    %1430 = vmatpush1.msra.mxu0 0.0
    %1431 = vmatprep.subr.mxu0 0.0
    %1432 = vmatpush1.msra.mxu0 0.0
    %1433 = vmatprep.subr.mxu0 0.0
    %1434 = vmatpush1.msra.mxu0 0.0
    %1435 = vmatprep.subr.mxu0 0.0
    %1436 = vmatpush1.msra.mxu0 0.0
    %1437 = vmatprep.mubr.f32.mxu0 0.0
    %1438 = vmatmul.mubr.f32.gmra.mrb[0].mxu0 %v964
    %v1439 = vpop.f32.mrb[0].mxu0
    %v1440 = vadd.f32 %v1363, %v1439
    %v1441 = vpop.f32.mrb[0].mxu0
    %1442 = vmatprep.mubr.f32.mxu0 0.0
    %1443 = vmatmul.mubr.f32.gmra.mrb[0].mxu0 %v967
    %v1444 = vpop.f32.mrb[0].mxu0
    %v1445 = vadd.f32 %v1365, %v1444
    %v1446 = vpop.f32.mrb[0].mxu0
    %1447 = vmatprep.mubr.f32.mxu0 0.0
    %1448 = vmatmul.mubr.f32.gmra.mrb[0].mxu0 %v970
    %v1449 = vpop.f32.mrb[0].mxu0
    %v1450 = vadd.f32 %v1367, %v1449
    %v1451 = vpop.f32.mrb[0].mxu0
    %1452 = vdwg.mxu0
    %v1453 = vlaneseq
    %v1454 = vshrl.u32 %v1453, 7
    %v1455 = vsub.s32 2, %v1454
    %v1456 = vrot.slane %v869, %v1455
    %v1457 = vadd.f32 %v1440, %v1456
    %v1458 = vadd.f32 %v1445, %v1456
    %v1459 = vadd.f32 %v1450, %v1456
    %vm1460 = vcmp.gt.f32.partialorder %v1457, 0.0
    %vm1461 = vcmp.gt.f32.partialorder %v1458, 0.0
    %vm1462 = vcmp.gt.f32.partialorder %v1459, 0.0
    %v1463 = vmul.f32 %v1457, 0.01
    %v1464 = vmul.f32 %v1458, 0.01
    %v1465 = vmul.f32 %v1459, 0.01
    %v1466 = vsel %vm1460, %v1457, %v1463
    %v1467 = vsel %vm1461, %v1458, %v1464
    %v1468 = vsel %vm1462, %v1459, %v1465
    %vm1469 = vcmp.gt.f32.partialorder %v843, 0.5
    %vm1470 = vcmp.gt.f32.partialorder %v844, 0.5
    %vm1471 = vcmp.gt.f32.partialorder %v845, 0.5
    %v1472 = vsel %vm1469, 1, 0
    %v1473 = vsel %vm1470, 1, 0
    %v1474 = vsel %vm1471, 1, 0
    %1475 = vset.pattern.permute.xlu0 0
    %1476 = vperm.xlu0 %1475, %v1472
    %v1477 = vpop.permute.xlu0 %1476
    %1478 = vset.pattern.permute.xlu0 0
    %1479 = vperm.xlu0 %1478, %v1473
    %v1480 = vpop.permute.xlu0 %1479
    %1481 = vset.pattern.permute.xlu0 0
    %1482 = vperm.xlu0 %1481, %v1474
    %v1483 = vpop.permute.xlu0 %1482
    %vm1484 = vcmp.eq.s32.totalorder %v1477, 1
    %vm1485 = vcmp.eq.s32.totalorder %v1480, 1
    %vm1486 = vcmp.eq.s32.totalorder %v1483, 1
    %v1487 = vsel %vm1484, %v1466, -1e+30
    %v1488 = vsel %vm1485, %v1467, -1e+30
    %v1489 = vsel %vm1486, %v1468, -1e+30
    %v1490 = vsel %vm728, %v1487, -inf
    %v1491 = vsel %vm728, %v1488, -inf
    %vm1492 = vcmask 259072
    %v1493 = vsel %vm1492, %v1489, -inf
    %v1494 = vmax.f32 %v1490, %v1491
    %v1495 = vmax.f32 %v1494, %v1493
    %v1496 = vrot.slane %v1495, 4
    %v1497 = vmax.f32 %v1495, %v1496
    %v1498 = vrot.slane %v1497, 2
    %v1499 = vmax.f32 %v1497, %v1498
    %v1500 = vrot.slane %v1499, 1
    %v1501 = vmax.f32 %v1499, %v1500
    %1502 = vset.pattern.permute.xlu0 1
    %1503 = vperm.xlu0 %1502, %v1472
    %v1504 = vpop.permute.xlu0 %1503
    %1505 = vset.pattern.permute.xlu0 1
    %1506 = vperm.xlu0 %1505, %v1473
    %v1507 = vpop.permute.xlu0 %1506
    %1508 = vset.pattern.permute.xlu0 1
    %1509 = vperm.xlu0 %1508, %v1474
    %v1510 = vpop.permute.xlu0 %1509
    %vm1511 = vcmp.eq.s32.totalorder %v1504, 1
    %vm1512 = vcmp.eq.s32.totalorder %v1507, 1
    %vm1513 = vcmp.eq.s32.totalorder %v1510, 1
    %v1514 = vsel %vm1511, %v1466, -1e+30
    %v1515 = vsel %vm1512, %v1467, -1e+30
    %v1516 = vsel %vm1513, %v1468, -1e+30
    %v1517 = vsel %vm728, %v1514, -inf
    %v1518 = vsel %vm728, %v1515, -inf
    %v1519 = vsel %vm1492, %v1516, -inf
    %v1520 = vmax.f32 %v1517, %v1518
    %v1521 = vmax.f32 %v1520, %v1519
    %v1522 = vrot.slane %v1521, 4
    %v1523 = vmax.f32 %v1521, %v1522
    %v1524 = vrot.slane %v1523, 2
    %v1525 = vmax.f32 %v1523, %v1524
    %v1526 = vrot.slane %v1525, 1
    %v1527 = vmax.f32 %v1525, %v1526
    %v1528 = vsel %vm758, %v1501, %v1527
    %v1529 = vlaneseq
    %v1530 = vshrl.u32 %v1529, 7
    %v1531 = vsub.s32 3, %v1530
    %v1532 = vrot.slane %v869, %v1531
    %v1534 = vsel %vm728, %v1528, 0
    %1536 = vmatprep.subr.mxu0 0.0
    %1537 = vmatpush1.msra.mxu0 %v865
    %1538 = vmatprep.subr.mxu0 0.0
    %1539 = vmatpush1.msra.mxu0 %v866
    %1540 = vmatprep.subr.mxu0 0.0
    %1541 = vmatpush1.msra.mxu0 %v867
    %1542 = vmatprep.subr.mxu0 0.0
    %1543 = vmatpush1.msra.mxu0 %v868
    %1544 = vmatprep.subr.mxu0 0.0
    %1545 = vmatpush1.msra.mxu0 0.0
    %1546 = vmatprep.subr.mxu0 0.0
    %1547 = vmatpush1.msra.mxu0 0.0
    %1548 = vmatprep.subr.mxu0 0.0
    %1549 = vmatpush1.msra.mxu0 0.0
    %1550 = vmatprep.subr.mxu0 0.0
    %1551 = vmatpush1.msra.mxu0 0.0
    %1552 = vmatprep.subr.mxu0 0.0
    %1553 = vmatpush1.msra.mxu0 0.0
    %1554 = vmatprep.subr.mxu0 0.0
    %1555 = vmatpush1.msra.mxu0 0.0
    %1556 = vmatprep.subr.mxu0 0.0
    %1557 = vmatpush1.msra.mxu0 0.0
    %1558 = vmatprep.subr.mxu0 0.0
    %1559 = vmatpush1.msra.mxu0 0.0
    %1560 = vmatprep.subr.mxu0 0.0
    %1561 = vmatpush1.msra.mxu0 0.0
    %1562 = vmatprep.subr.mxu0 0.0
    %1563 = vmatpush1.msra.mxu0 0.0
    %1564 = vmatprep.subr.mxu0 0.0
    %1565 = vmatpush1.msra.mxu0 0.0
    %1566 = vmatprep.subr.mxu0 0.0
    %1567 = vmatpush1.msra.mxu0 0.0
    %1568 = vmatprep.subr.mxu0 0.0
    %1569 = vmatpush1.msra.mxu0 0.0
    %1570 = vmatprep.subr.mxu0 0.0
    %1571 = vmatpush1.msra.mxu0 0.0
    %1572 = vmatprep.subr.mxu0 0.0
    %1573 = vmatpush1.msra.mxu0 0.0
    %1574 = vmatprep.subr.mxu0 0.0
    %1575 = vmatpush1.msra.mxu0 0.0
    %1576 = vmatprep.subr.mxu0 0.0
    %1577 = vmatpush1.msra.mxu0 0.0
    %1578 = vmatprep.subr.mxu0 0.0
    %1579 = vmatpush1.msra.mxu0 0.0
    %1580 = vmatprep.subr.mxu0 0.0
    %1581 = vmatpush1.msra.mxu0 0.0
    %1582 = vmatprep.subr.mxu0 0.0
    %1583 = vmatpush1.msra.mxu0 0.0
    %1584 = vmatprep.subr.mxu0 0.0
    %1585 = vmatpush1.msra.mxu0 0.0
    %1586 = vmatprep.subr.mxu0 0.0
    %1587 = vmatpush1.msra.mxu0 0.0
    %1588 = vmatprep.subr.mxu0 0.0
    %1589 = vmatpush1.msra.mxu0 0.0
    %1590 = vmatprep.subr.mxu0 0.0
    %1591 = vmatpush1.msra.mxu0 0.0
    %1592 = vmatprep.subr.mxu0 0.0
    %1593 = vmatpush1.msra.mxu0 0.0
    %1594 = vmatprep.subr.mxu0 0.0
    %1595 = vmatpush1.msra.mxu0 0.0
    %1596 = vmatprep.subr.mxu0 0.0
    %1597 = vmatpush1.msra.mxu0 0.0
    %1598 = vmatprep.subr.mxu0 0.0
    %1599 = vmatpush1.msra.mxu0 0.0
    %1600 = vmatprep.mubr.f32.mxu0 0.0
    %1601 = vmatmul.mubr.f32.gmra.mrb[0].mxu0 %v1534
    %v1602 = vpop.f32.mrb[0].mxu0
    %v1603 = vadd.f32 %v1532, %v1602
    %v1604 = vpop.f32.mrb[0].mxu0
    %1605 = vdwg.mxu0
    %vm1606 = vcmp.gt.f32.partialorder %v1603, 0.0
    %v1607 = vmul.f32 %v1603, 0.01
    %v1608 = vsel %vm1606, %v1603, %v1607
    %v1609 = vld [vmem:[#allocation2] sm:$0xff]
    %v1610 = vld [vmem:[#allocation2 + $0x8] sm:$0xff]
    %v1611 = vld [vmem:[#allocation2 + $0x10] sm:$0xff]
    %v1612 = vld [vmem:[#allocation2 + $0x18] sm:$0xff]
    %v1613 = vld [vmem:[#allocation2 + $0x20] sm:$0xff]
    %v1614 = vld [vmem:[#allocation2 + $0x28] sm:$0xff]
    %v1615 = vld [vmem:[#allocation2 + $0x30] sm:$0xff]
    %v1616 = vld [vmem:[#allocation2 + $0x38] sm:$0xff]
    %v1617 = vld [vmem:[#allocation2 + $0x40] sm:$0xff]
    %v1618 = vld [vmem:[#allocation2 + $0x48] sm:$0xff]
    %v1619 = vld [vmem:[#allocation2 + $0x50] sm:$0xff]
    %v1620 = vld [vmem:[#allocation2 + $0x58] sm:$0xff]
    %v1621 = vld [vmem:[#allocation2 + $0x60] sm:$0xff]
    %v1622 = vld [vmem:[#allocation2 + $0x68] sm:$0xff]
    %v1623 = vld [vmem:[#allocation2 + $0x70] sm:$0xff]
    %v1624 = vld [vmem:[#allocation2 + $0x78] sm:$0xff]
    %v1625 = vld [vmem:[#allocation2 + $0x80] sm:$0xff]
    %v1626 = vld [vmem:[#allocation2 + $0x90] sm:$0xff]
    %v1627 = vld [vmem:[#allocation2 + $0xa0] sm:$0xff]
    %v1628 = vld [vmem:[#allocation2 + $0xb0] sm:$0xff]
    %v1629 = vld [vmem:[#allocation2 + $0xc0] sm:$0xff]
    %v1630 = vld [vmem:[#allocation2 + $0xd0] sm:$0xff]
    %v1631 = vld [vmem:[#allocation2 + $0xe0] sm:$0xff]
    %v1632 = vld [vmem:[#allocation2 + $0xf0] sm:$0xff]
    %v1633 = vld [vmem:[#allocation2 + $0x100] sm:$0xff]
    %v1634 = vld [vmem:[#allocation2 + $0x110] sm:$0xff]
    %v1635 = vld [vmem:[#allocation2 + $0x120] sm:$0xff]
    %v1636 = vld [vmem:[#allocation2 + $0x130] sm:$0xff]
    %v1637 = vld [vmem:[#allocation2 + $0x140] sm:$0xff]
    %v1638 = vld [vmem:[#allocation2 + $0x150] sm:$0xff]
    %v1639 = vld [vmem:[#allocation2 + $0x160] sm:$0xff]
    %v1640 = vld [vmem:[#allocation2 + $0x170] sm:$0xff]
    %v1641 = vld [vmem:[#allocation2 + $0x180] sm:$0xff]
    %v1642 = vld [vmem:[#allocation2 + $0x190] sm:$0xff]
    %v1643 = vld [vmem:[#allocation2 + $0x1a0] sm:$0xff]
    %v1644 = vld [vmem:[#allocation2 + $0x1b0] sm:$0xff]
    %v1645 = vld [vmem:[#allocation2 + $0x1c0] sm:$0xff]
    %v1646 = vld [vmem:[#allocation2 + $0x1d0] sm:$0xff]
    %v1647 = vld [vmem:[#allocation2 + $0x1e0] sm:$0xff]
    %v1648 = vld [vmem:[#allocation2 + $0x1f0] sm:$0xff]
    %v1649 = vld [vmem:[#allocation2 + $0x200] sm:$0xff]
    %v1650 = vld [vmem:[#allocation2 + $0x210] sm:$0xff]
    %v1651 = vld [vmem:[#allocation2 + $0x220] sm:$0xff]
    %v1652 = vld [vmem:[#allocation2 + $0x230] sm:$0xff]
    %v1653 = vld [vmem:[#allocation2 + $0x240] sm:$0xff]
    %v1654 = vld [vmem:[#allocation2 + $0x250] sm:$0xff]
    %v1655 = vld [vmem:[#allocation2 + $0x260] sm:$0xff]
    %v1656 = vld [vmem:[#allocation2 + $0x270] sm:$0xff]
    %v1657 = vld [vmem:[#allocation2 + $0x280] sm:$0x3]
    %v1658 = vld [vmem:[#allocation2 + $0x288] sm:$0x3]
    %1660 = vrot.lane.b32.xlu0 %v1608, 32
    %v1661 = vpop.permute.xlu0 %1660
    %v1663 = vsel %vm728, %v839, %v1661
    %v1664 = vlaneseq
    %v1665 = vshrl.u32 %v1664, 7
    %v1666 = vsub.s32 0, %v1665
    %v1667 = vrot.slane %v1657, %v1666
    %v1668 = vlaneseq
    %v1669 = vshrl.u32 %v1668, 7
    %v1670 = vsub.s32 0, %v1669
    %v1671 = vrot.slane %v1658, %v1670
    %vm1672 = vcmask 523264
    %v1674 = vsel %vm1672, %v1663, 0
    %1676 = vmatprep.subr.mxu0 %v1610
    %1677 = vmatpush1.msra.mxu0 %v1609
    %1678 = vmatprep.subr.mxu0 %v1612
    %1679 = vmatpush1.msra.mxu0 %v1611
    %1680 = vmatprep.subr.mxu0 %v1614
    %1681 = vmatpush1.msra.mxu0 %v1613
    %1682 = vmatprep.subr.mxu0 %v1616
    %1683 = vmatpush1.msra.mxu0 %v1615
    %1684 = vmatprep.subr.mxu0 %v1618
    %1685 = vmatpush1.msra.mxu0 %v1617
    %1686 = vmatprep.subr.mxu0 %v1620
    %1687 = vmatpush1.msra.mxu0 %v1619
    %1688 = vmatprep.subr.mxu0 %v1622
    %1689 = vmatpush1.msra.mxu0 %v1621
    %1690 = vmatprep.subr.mxu0 %v1624
    %1691 = vmatpush1.msra.mxu0 %v1623
    %1692 = vmatprep.subr.mxu0 0.0
    %1693 = vmatpush1.msra.mxu0 0.0
    %1694 = vmatprep.subr.mxu0 0.0
    %1695 = vmatpush1.msra.mxu0 0.0
    %1696 = vmatprep.subr.mxu0 0.0
    %1697 = vmatpush1.msra.mxu0 0.0
    %1698 = vmatprep.subr.mxu0 0.0
    %1699 = vmatpush1.msra.mxu0 0.0
    %1700 = vmatprep.subr.mxu0 0.0
    %1701 = vmatpush1.msra.mxu0 0.0
    %1702 = vmatprep.subr.mxu0 0.0
    %1703 = vmatpush1.msra.mxu0 0.0
    %1704 = vmatprep.subr.mxu0 0.0
    %1705 = vmatpush1.msra.mxu0 0.0
    %1706 = vmatprep.subr.mxu0 0.0
    %1707 = vmatpush1.msra.mxu0 0.0
    %1708 = vmatprep.subr.mxu0 0.0
    %1709 = vmatpush1.msra.mxu0 0.0
    %1710 = vmatprep.subr.mxu0 0.0
    %1711 = vmatpush1.msra.mxu0 0.0
    %1712 = vmatprep.subr.mxu0 0.0
    %1713 = vmatpush1.msra.mxu0 0.0
    %1714 = vmatprep.subr.mxu0 0.0
    %1715 = vmatpush1.msra.mxu0 0.0
    %1716 = vmatprep.subr.mxu0 0.0
    %1717 = vmatpush1.msra.mxu0 0.0
    %1718 = vmatprep.subr.mxu0 0.0
    %1719 = vmatpush1.msra.mxu0 0.0
    %1720 = vmatprep.subr.mxu0 0.0
    %1721 = vmatpush1.msra.mxu0 0.0
    %1722 = vmatprep.subr.mxu0 0.0
    %1723 = vmatpush1.msra.mxu0 0.0
    %1724 = vmatprep.subr.mxu0 0.0
    %1725 = vmatpush1.msra.mxu0 0.0
    %1726 = vmatprep.subr.mxu0 0.0
    %1727 = vmatpush1.msra.mxu0 0.0
    %1728 = vmatprep.subr.mxu0 0.0
    %1729 = vmatpush1.msra.mxu0 0.0
    %1730 = vmatprep.subr.mxu0 0.0
    %1731 = vmatpush1.msra.mxu0 0.0
    %1732 = vmatprep.subr.mxu0 0.0
    %1733 = vmatpush1.msra.mxu0 0.0
    %1734 = vmatprep.subr.mxu0 0.0
    %1735 = vmatpush1.msra.mxu0 0.0
    %1736 = vmatprep.subr.mxu0 0.0
    %1737 = vmatpush1.msra.mxu0 0.0
    %1738 = vmatprep.subr.mxu0 0.0
    %1739 = vmatpush1.msra.mxu0 0.0
    %1740 = vmatprep.mubr.f32.mxu0 0.0
    %1741 = vmatmul.mubr.f32.gmra.mrb[0].mxu0 %v1674
    %v1742 = vpop.f32.mrb[0].mxu0
    %v1743 = vadd.f32 %v1667, %v1742
    %v1744 = vpop.f32.mrb[0].mxu0
    %v1745 = vadd.f32 %v1671, %v1744
    %1746 = vdwg.mxu0
    %vm1747 = vcmp.gt.f32.partialorder %v1743, 0.0
    %vm1748 = vcmp.gt.f32.partialorder %v1745, 0.0
    %v1749 = vmul.f32 %v1743, 0.01
    %v1750 = vmul.f32 %v1745, 0.01
    %v1751 = vsel %vm1747, %v1743, %v1749
    %v1752 = vsel %vm1748, %v1745, %v1750
    %v1753 = vlaneseq
    %v1754 = vshrl.u32 %v1753, 7
    %v1755 = vsub.s32 1, %v1754
    %v1756 = vrot.slane %v1657, %v1755
    %1757 = vmatprep.subr.mxu0 0.0
    %1758 = vmatpush1.msra.mxu0 %v1625
    %1759 = vmatprep.subr.mxu0 0.0
    %1760 = vmatpush1.msra.mxu0 %v1626
    %1761 = vmatprep.subr.mxu0 0.0
    %1762 = vmatpush1.msra.mxu0 %v1627
    %1763 = vmatprep.subr.mxu0 0.0
    %1764 = vmatpush1.msra.mxu0 %v1628
    %1765 = vmatprep.subr.mxu0 0.0
    %1766 = vmatpush1.msra.mxu0 %v1629
    %1767 = vmatprep.subr.mxu0 0.0
    %1768 = vmatpush1.msra.mxu0 %v1630
    %1769 = vmatprep.subr.mxu0 0.0
    %1770 = vmatpush1.msra.mxu0 %v1631
    %1771 = vmatprep.subr.mxu0 0.0
    %1772 = vmatpush1.msra.mxu0 %v1632
    %1773 = vmatprep.subr.mxu0 0.0
    %1774 = vmatpush1.msra.mxu0 %v1633
    %1775 = vmatprep.subr.mxu0 0.0
    %1776 = vmatpush1.msra.mxu0 %v1634
    %1777 = vmatprep.subr.mxu0 0.0
    %1778 = vmatpush1.msra.mxu0 %v1635
    %1779 = vmatprep.subr.mxu0 0.0
    %1780 = vmatpush1.msra.mxu0 %v1636
    %1781 = vmatprep.subr.mxu0 0.0
    %1782 = vmatpush1.msra.mxu0 %v1637
    %1783 = vmatprep.subr.mxu0 0.0
    %1784 = vmatpush1.msra.mxu0 %v1638
    %1785 = vmatprep.subr.mxu0 0.0
    %1786 = vmatpush1.msra.mxu0 %v1639
    %1787 = vmatprep.subr.mxu0 0.0
    %1788 = vmatpush1.msra.mxu0 %v1640
    %1789 = vmatprep.subr.mxu0 0.0
    %1790 = vmatpush1.msra.mxu0 %v1641
    %1791 = vmatprep.subr.mxu0 0.0
    %1792 = vmatpush1.msra.mxu0 %v1642
    %1793 = vmatprep.subr.mxu0 0.0
    %1794 = vmatpush1.msra.mxu0 %v1643
    %1795 = vmatprep.subr.mxu0 0.0
    %1796 = vmatpush1.msra.mxu0 %v1644
    %1797 = vmatprep.subr.mxu0 0.0
    %1798 = vmatpush1.msra.mxu0 %v1645
    %1799 = vmatprep.subr.mxu0 0.0
    %1800 = vmatpush1.msra.mxu0 %v1646
    %1801 = vmatprep.subr.mxu0 0.0
    %1802 = vmatpush1.msra.mxu0 %v1647
    %1803 = vmatprep.subr.mxu0 0.0
    %1804 = vmatpush1.msra.mxu0 %v1648
    %1805 = vmatprep.subr.mxu0 0.0
    %1806 = vmatpush1.msra.mxu0 %v1649
    %1807 = vmatprep.subr.mxu0 0.0
    %1808 = vmatpush1.msra.mxu0 %v1650
    %1809 = vmatprep.subr.mxu0 0.0
    %1810 = vmatpush1.msra.mxu0 %v1651
    %1811 = vmatprep.subr.mxu0 0.0
    %1812 = vmatpush1.msra.mxu0 %v1652
    %1813 = vmatprep.subr.mxu0 0.0
    %1814 = vmatpush1.msra.mxu0 %v1653
    %1815 = vmatprep.subr.mxu0 0.0
    %1816 = vmatpush1.msra.mxu0 %v1654
    %1817 = vmatprep.subr.mxu0 0.0
    %1818 = vmatpush1.msra.mxu0 %v1655
    %1819 = vmatprep.subr.mxu0 0.0
    %1820 = vmatpush1.msra.mxu0 %v1656
    %1821 = vmatprep.mubr.f32.mxu0 %v1752
    %1822 = vmatmul.mubr.f32.gmra.mrb[0].mxu0 %v1751
    %v1823 = vpop.f32.mrb[0].mxu0
    %v1824 = vadd.f32 %v1756, %v1823
    %v1825 = vpop.f32.mrb[0].mxu0
    %1826 = vdwg.mxu0
    %1827 = vst [vmem:[#allocation5] sm:$0x3] %v1824
    // Predicated region
    $region46: #{tpu_custom_call.1} parent=1 // pred_check
      _
    $region47: #{tpu_custom_call.1} parent=1 // pred_check_branch
      %1829 = sbr.rel (0) target = $region49
    $region48: #{tpu_custom_call.1} parent=1 // pred_region
      %s1831 = ssub.s32 32, 32
      %1832 = vsyncadd [#allocation4], %s1831
      %s1834 = sshll.u32 [#allocation5], 4
      %s1835 = int_to_ptr.vmem [resolvable:$true] %s1834
      %1837 = dma.vmem_to_hbm [thread:$0]  %s1835, 32, %s10, [#allocation4]
    $region49: #{tpu_custom_call.1} parent=1 // pred_fallthru
      _
    // Predicated region
    $region50: #{tpu_custom_call.1} parent=1 // pred_check
      _
    $region51: #{tpu_custom_call.1} parent=1 // pred_check_branch
      %1839 = sbr.rel (0) target = $region53
    $region52: #{tpu_custom_call.1} parent=1 // pred_region
      %1840 = dma.done [#allocation4], 32
    $region53: #{tpu_custom_call.1} parent=1 // pred_fallthru
      _
    %1841 = vsyncpa [#allocation3], 1
    %1842 = vsyncpa [#allocation4], 1

</llo_original>
